<compile_context>
chip_gen: v6e
topology: v6e:2x2x1
jax: 0.10.0
libtpu: 0.0.40
codegen_flags: <defaults>
</compile_context>

<pallas_src>
import math

import jax
import jax.numpy as jnp
from jax.experimental import pallas as pl
from jax.experimental.pallas import tpu as pltpu

NEG_SLOPE = 0.2  # F.leaky_relu negative_slope used by PyG GATConv

HEADS = 3
HIDDEN = 32
OUT_SIZE = 4
IN_SIZE = 16
N_NODES = 8


# ----------------------------------------------------------------------------
# In-kernel GAT layer (operates on values; only the final result is stored)
# ----------------------------------------------------------------------------
def _gat_layer(x, w, a_dst_bd, a_src_bd, bias, neg_mask, *, heads, out_ch,
               concat, apply_relu):
    xw = jnp.dot(x, w, preferred_element_type=jnp.float32)            # [N, H*C]

    # Per-head attention logits via two small MXU matmuls against the
    # block-diagonal attention vectors (one pass each, no per-head slicing).
    alpha_dst = jnp.dot(xw, a_dst_bd,
                        preferred_element_type=jnp.float32)           # [N, H]
    alpha_src_t = jax.lax.dot_general(                                 # [H, N]
        a_src_bd, xw, (((0,), (1,)), ((), ())),
        preferred_element_type=jnp.float32)

    head_outs = []
    for h in range(heads):
        e = alpha_dst[:, h:h + 1] + alpha_src_t[h:h + 1, :]            # [N, N]
        e = jnp.where(e > 0, e, NEG_SLOPE * e)                         # LeakyReLU
        e = e + neg_mask                                               # mask non-edges
        m = jnp.max(e, axis=-1, keepdims=True)
        p = jnp.exp(e - m)
        inv = pl.reciprocal(jnp.sum(p, axis=-1, keepdims=True), approx=True)
        attn = p * inv                                                 # row softmax
        # TODO(synk): attention-coefficient dropout is training-only in PyG;
        # eval-mode (identity) semantics are implemented here.
        head_outs.append(
            jnp.dot(attn, xw[:, h * out_ch:(h + 1) * out_ch],
                    preferred_element_type=jnp.float32))               # [N, C]

    if concat:
        out = jnp.concatenate(head_outs, axis=-1) + bias               # [N, H*C]
    else:
        out = head_outs[0]
        for h in range(1, heads):
            out = out + head_outs[h]
        out = out * (1.0 / heads) + bias                               # [N, C]
    if apply_relu:
        out = jnp.maximum(out, 0.0)
    return out


# ----------------------------------------------------------------------------
# Fused kernel: adjacency build + gconv1 + ReLU + gconv2 + ReLU + gconv_out +
# classifier, all resident in VMEM.
# ----------------------------------------------------------------------------
def _fused_gat_kernel(edge_ref, x_ref,
                      w1_ref, ad1_ref, as1_ref, b1_ref,
                      w2_ref, ad2_ref, as2_ref, b2_ref,
                      w3_ref, ad3_ref, as3_ref, b3_ref,
                      cw_ref, cb_ref,
                      o_ref):
    n = x_ref.shape[0]
    num_edges = edge_ref.shape[1]

    # Dense adjacency mask adj[dst, src] (plus self loops), built once from the
    # SMEM edge list; converted to an additive -inf-style mask shared by all
    # heads and all three layers.
    rows = jax.lax.broadcasted_iota(jnp.int32, (n, n), 0)   # dst index i
    cols = jax.lax.broadcasted_iota(jnp.int32, (n, n), 1)   # src index j
    adj = rows == cols                                      # self loops
    for e in range(num_edges):                              # static unroll (E small)
        s = edge_ref[0, e]
        d = edge_ref[1, e]
        adj = jnp.logical_or(adj, jnp.logical_and(rows == d, cols == s))
    neg_mask = jnp.where(adj, 0.0, -1e30).astype(jnp.float32)

    x = x_ref[...].astype(jnp.float32)

    out = _gat_layer(x, w1_ref[...], ad1_ref[...], as1_ref[...], b1_ref[...],
                     neg_mask, heads=HEADS, out_ch=HIDDEN, concat=True,
                     apply_relu=True)                        # gconv1 + ReLU
    out = _gat_layer(out, w2_ref[...], ad2_ref[...], as2_ref[...], b2_ref[...],
                     neg_mask, heads=HEADS, out_ch=HIDDEN, concat=True,
                     apply_relu=True)                        # gconv2 + ReLU
    out = _gat_layer(out, w3_ref[...], ad3_ref[...], as3_ref[...], b3_ref[...],
                     neg_mask, heads=1, out_ch=HIDDEN, concat=False,
                     apply_relu=False)                       # gconv_out (mean)

    logits = (jnp.dot(out, cw_ref[...], preferred_element_type=jnp.float32)
              + cb_ref[...])                                 # classifier
    o_ref[...] = logits.astype(o_ref.dtype)                  # single store


# ----------------------------------------------------------------------------
# Wrapper
# ----------------------------------------------------------------------------
def gat_for_dialog(x, edge_index, params):
    n = x.shape[0]
    p1, p2, p3 = params["gconv1"], params["gconv2"], params["gconv_out"]

    vmem = pl.BlockSpec(memory_space=pltpu.MemorySpace.VMEM)
    smem = pl.BlockSpec(memory_space=pltpu.MemorySpace.SMEM)

    out = pl.pallas_call(
        _fused_gat_kernel,
        out_shape=jax.ShapeDtypeStruct((n, OUT_SIZE), jnp.float32),
        in_specs=[smem] + [vmem] * 15,
        out_specs=vmem,
    )(edge_index.astype(jnp.int32), x,
      p1["w"], p1["a_dst_bd"], p1["a_src_bd"], p1["bias"],
      p2["w"], p2["a_dst_bd"], p2["a_src_bd"], p2["bias"],
      p3["w"], p3["a_dst_bd"], p3["a_src_bd"], p3["bias"],
      params["cls_w"], params["cls_b"])
    return out, {}


# ----------------------------------------------------------------------------
# Parameter init (deterministic, synthetic)
# ----------------------------------------------------------------------------
def _block_diag(att):
    """[heads, C] attention vector -> [heads*C, heads] block-diagonal matrix."""
    heads, c = att.shape
    eye = jnp.eye(heads, dtype=att.dtype)
    return (att[:, :, None] * eye[:, None, :]).reshape(heads * c, heads)


def init_gat_params(key, in_dim, out_ch, heads, concat):
    k1, k2, k3 = jax.random.split(key, 3)
    w = jax.random.normal(k1, (in_dim, heads * out_ch), jnp.float32) \
        * (1.0 / math.sqrt(in_dim))
    att_src = jax.random.normal(k2, (heads, out_ch), jnp.float32) \
        * (1.0 / math.sqrt(out_ch))
    att_dst = jax.random.normal(k3, (heads, out_ch), jnp.float32) \
        * (1.0 / math.sqrt(out_ch))
    bias_dim = heads * out_ch if concat else out_ch
    bias = jnp.zeros((1, bias_dim), jnp.float32)
    return dict(w=w,
                a_src_bd=_block_diag(att_src),
                a_dst_bd=_block_diag(att_dst),
                bias=bias)


def init_model_params(key):
    k1, k2, k3, k4, k5 = jax.random.split(key, 5)
    return dict(
        gconv1=init_gat_params(k1, IN_SIZE, HIDDEN, HEADS, True),
        gconv2=init_gat_params(k2, HIDDEN * HEADS, HIDDEN, HEADS, True),
        gconv_out=init_gat_params(k3, HIDDEN * HEADS, HIDDEN, 1, False),
        cls_w=jax.random.normal(k4, (HIDDEN, OUT_SIZE), jnp.float32)
        * (1.0 / math.sqrt(HIDDEN)),
        cls_b=jax.random.normal(k5, (1, OUT_SIZE), jnp.float32) * 0.01,
    )


# ----------------------------------------------------------------------------
if __name__ == "__main__":
    key = jax.random.PRNGKey(0)
    k_x, k_p = jax.random.split(key)

    x = jax.random.normal(k_x, (N_NODES, IN_SIZE), jnp.float32)

    # small ring graph, edges in both directions: 2 * N edges, shape [2, E]
    src = jnp.concatenate([jnp.arange(N_NODES),
                           (jnp.arange(N_NODES) + 1) % N_NODES])
    dst = jnp.concatenate([(jnp.arange(N_NODES) + 1) % N_NODES,
                           jnp.arange(N_NODES)])
    edge_index = jnp.stack([src, dst]).astype(jnp.int32)   # [2, 16]

    params = init_model_params(k_p)

    out, log = gat_for_dialog(x, edge_index, params)
    out = jax.block_until_ready(out)
    assert out.shape == (N_NODES, OUT_SIZE)
    assert bool(jnp.all(jnp.isfinite(out)))
    print("KERNEL_OK")
</pallas_src>

<mosaic_0001>
module attributes {stable_mosaic.version = 11 : i64} {
  func.func @_fused_gat_kernel(%arg0: memref<2x16xi32, #tpu.memory_space<smem>>, %arg1: memref<8x16xf32, #tpu.memory_space<vmem>>, %arg2: memref<16x96xf32, #tpu.memory_space<vmem>>, %arg3: memref<96x3xf32, #tpu.memory_space<vmem>>, %arg4: memref<96x3xf32, #tpu.memory_space<vmem>>, %arg5: memref<1x96xf32, #tpu.memory_space<vmem>>, %arg6: memref<96x96xf32, #tpu.memory_space<vmem>>, %arg7: memref<96x3xf32, #tpu.memory_space<vmem>>, %arg8: memref<96x3xf32, #tpu.memory_space<vmem>>, %arg9: memref<1x96xf32, #tpu.memory_space<vmem>>, %arg10: memref<96x32xf32, #tpu.memory_space<vmem>>, %arg11: memref<32x1xf32, #tpu.memory_space<vmem>>, %arg12: memref<32x1xf32, #tpu.memory_space<vmem>>, %arg13: memref<1x32xf32, #tpu.memory_space<vmem>>, %arg14: memref<32x4xf32, #tpu.memory_space<vmem>>, %arg15: memref<1x4xf32, #tpu.memory_space<vmem>>, %arg16: memref<8x4xf32, #tpu.memory_space<vmem>>) attributes {dimension_semantics = [], scalar_prefetch = 0 : i64, scratch_operands = 0 : i64, tpu.core_type = #tpu.core_type<tc>} {
    %0 = tpu.iota {dimensions = array<i32: 0>} : vector<8x8xi32>
    %1 = tpu.iota {dimensions = array<i32: 1>} : vector<8x8xi32>
    %2 = arith.cmpi eq, %0, %1 : vector<8x8xi32>
    %c0 = arith.constant 0 : index
    %c0_0 = arith.constant 0 : index
    %3 = memref.load %arg0[%c0, %c0_0] : memref<2x16xi32, #tpu.memory_space<smem>>
    %c1 = arith.constant 1 : index
    %c0_1 = arith.constant 0 : index
    %4 = memref.load %arg0[%c1, %c0_1] : memref<2x16xi32, #tpu.memory_space<smem>>
    %5 = vector.broadcast %4 : i32 to vector<8x8xi32>
    %6 = arith.cmpi eq, %0, %5 : vector<8x8xi32>
    %7 = vector.broadcast %3 : i32 to vector<8x8xi32>
    %8 = arith.cmpi eq, %1, %7 : vector<8x8xi32>
    %9 = arith.andi %6, %8 : vector<8x8xi1>
    %10 = arith.ori %2, %9 : vector<8x8xi1>
    %c0_2 = arith.constant 0 : index
    %c1_3 = arith.constant 1 : index
    %11 = memref.load %arg0[%c0_2, %c1_3] : memref<2x16xi32, #tpu.memory_space<smem>>
    %c1_4 = arith.constant 1 : index
    %c1_5 = arith.constant 1 : index
    %12 = memref.load %arg0[%c1_4, %c1_5] : memref<2x16xi32, #tpu.memory_space<smem>>
    %13 = vector.broadcast %12 : i32 to vector<8x8xi32>
    %14 = arith.cmpi eq, %0, %13 : vector<8x8xi32>
    %15 = vector.broadcast %11 : i32 to vector<8x8xi32>
    %16 = arith.cmpi eq, %1, %15 : vector<8x8xi32>
    %17 = arith.andi %14, %16 : vector<8x8xi1>
    %18 = arith.ori %10, %17 : vector<8x8xi1>
    %c0_6 = arith.constant 0 : index
    %c2 = arith.constant 2 : index
    %19 = memref.load %arg0[%c0_6, %c2] : memref<2x16xi32, #tpu.memory_space<smem>>
    %c1_7 = arith.constant 1 : index
    %c2_8 = arith.constant 2 : index
    %20 = memref.load %arg0[%c1_7, %c2_8] : memref<2x16xi32, #tpu.memory_space<smem>>
    %21 = vector.broadcast %20 : i32 to vector<8x8xi32>
    %22 = arith.cmpi eq, %0, %21 : vector<8x8xi32>
    %23 = vector.broadcast %19 : i32 to vector<8x8xi32>
    %24 = arith.cmpi eq, %1, %23 : vector<8x8xi32>
    %25 = arith.andi %22, %24 : vector<8x8xi1>
    %26 = arith.ori %18, %25 : vector<8x8xi1>
    %c0_9 = arith.constant 0 : index
    %c3 = arith.constant 3 : index
    %27 = memref.load %arg0[%c0_9, %c3] : memref<2x16xi32, #tpu.memory_space<smem>>
    %c1_10 = arith.constant 1 : index
    %c3_11 = arith.constant 3 : index
    %28 = memref.load %arg0[%c1_10, %c3_11] : memref<2x16xi32, #tpu.memory_space<smem>>
    %29 = vector.broadcast %28 : i32 to vector<8x8xi32>
    %30 = arith.cmpi eq, %0, %29 : vector<8x8xi32>
    %31 = vector.broadcast %27 : i32 to vector<8x8xi32>
    %32 = arith.cmpi eq, %1, %31 : vector<8x8xi32>
    %33 = arith.andi %30, %32 : vector<8x8xi1>
    %34 = arith.ori %26, %33 : vector<8x8xi1>
    %c0_12 = arith.constant 0 : index
    %c4 = arith.constant 4 : index
    %35 = memref.load %arg0[%c0_12, %c4] : memref<2x16xi32, #tpu.memory_space<smem>>
    %c1_13 = arith.constant 1 : index
    %c4_14 = arith.constant 4 : index
    %36 = memref.load %arg0[%c1_13, %c4_14] : memref<2x16xi32, #tpu.memory_space<smem>>
    %37 = vector.broadcast %36 : i32 to vector<8x8xi32>
    %38 = arith.cmpi eq, %0, %37 : vector<8x8xi32>
    %39 = vector.broadcast %35 : i32 to vector<8x8xi32>
    %40 = arith.cmpi eq, %1, %39 : vector<8x8xi32>
    %41 = arith.andi %38, %40 : vector<8x8xi1>
    %42 = arith.ori %34, %41 : vector<8x8xi1>
    %c0_15 = arith.constant 0 : index
    %c5 = arith.constant 5 : index
    %43 = memref.load %arg0[%c0_15, %c5] : memref<2x16xi32, #tpu.memory_space<smem>>
    %c1_16 = arith.constant 1 : index
    %c5_17 = arith.constant 5 : index
    %44 = memref.load %arg0[%c1_16, %c5_17] : memref<2x16xi32, #tpu.memory_space<smem>>
    %45 = vector.broadcast %44 : i32 to vector<8x8xi32>
    %46 = arith.cmpi eq, %0, %45 : vector<8x8xi32>
    %47 = vector.broadcast %43 : i32 to vector<8x8xi32>
    %48 = arith.cmpi eq, %1, %47 : vector<8x8xi32>
    %49 = arith.andi %46, %48 : vector<8x8xi1>
    %50 = arith.ori %42, %49 : vector<8x8xi1>
    %c0_18 = arith.constant 0 : index
    %c6 = arith.constant 6 : index
    %51 = memref.load %arg0[%c0_18, %c6] : memref<2x16xi32, #tpu.memory_space<smem>>
    %c1_19 = arith.constant 1 : index
    %c6_20 = arith.constant 6 : index
    %52 = memref.load %arg0[%c1_19, %c6_20] : memref<2x16xi32, #tpu.memory_space<smem>>
    %53 = vector.broadcast %52 : i32 to vector<8x8xi32>
    %54 = arith.cmpi eq, %0, %53 : vector<8x8xi32>
    %55 = vector.broadcast %51 : i32 to vector<8x8xi32>
    %56 = arith.cmpi eq, %1, %55 : vector<8x8xi32>
    %57 = arith.andi %54, %56 : vector<8x8xi1>
    %58 = arith.ori %50, %57 : vector<8x8xi1>
    %c0_21 = arith.constant 0 : index
    %c7 = arith.constant 7 : index
    %59 = memref.load %arg0[%c0_21, %c7] : memref<2x16xi32, #tpu.memory_space<smem>>
    %c1_22 = arith.constant 1 : index
    %c7_23 = arith.constant 7 : index
    %60 = memref.load %arg0[%c1_22, %c7_23] : memref<2x16xi32, #tpu.memory_space<smem>>
    %61 = vector.broadcast %60 : i32 to vector<8x8xi32>
    %62 = arith.cmpi eq, %0, %61 : vector<8x8xi32>
    %63 = vector.broadcast %59 : i32 to vector<8x8xi32>
    %64 = arith.cmpi eq, %1, %63 : vector<8x8xi32>
    %65 = arith.andi %62, %64 : vector<8x8xi1>
    %66 = arith.ori %58, %65 : vector<8x8xi1>
    %c0_24 = arith.constant 0 : index
    %c8 = arith.constant 8 : index
    %67 = memref.load %arg0[%c0_24, %c8] : memref<2x16xi32, #tpu.memory_space<smem>>
    %c1_25 = arith.constant 1 : index
    %c8_26 = arith.constant 8 : index
    %68 = memref.load %arg0[%c1_25, %c8_26] : memref<2x16xi32, #tpu.memory_space<smem>>
    %69 = vector.broadcast %68 : i32 to vector<8x8xi32>
    %70 = arith.cmpi eq, %0, %69 : vector<8x8xi32>
    %71 = vector.broadcast %67 : i32 to vector<8x8xi32>
    %72 = arith.cmpi eq, %1, %71 : vector<8x8xi32>
    %73 = arith.andi %70, %72 : vector<8x8xi1>
    %74 = arith.ori %66, %73 : vector<8x8xi1>
    %c0_27 = arith.constant 0 : index
    %c9 = arith.constant 9 : index
    %75 = memref.load %arg0[%c0_27, %c9] : memref<2x16xi32, #tpu.memory_space<smem>>
    %c1_28 = arith.constant 1 : index
    %c9_29 = arith.constant 9 : index
    %76 = memref.load %arg0[%c1_28, %c9_29] : memref<2x16xi32, #tpu.memory_space<smem>>
    %77 = vector.broadcast %76 : i32 to vector<8x8xi32>
    %78 = arith.cmpi eq, %0, %77 : vector<8x8xi32>
    %79 = vector.broadcast %75 : i32 to vector<8x8xi32>
    %80 = arith.cmpi eq, %1, %79 : vector<8x8xi32>
    %81 = arith.andi %78, %80 : vector<8x8xi1>
    %82 = arith.ori %74, %81 : vector<8x8xi1>
    %c0_30 = arith.constant 0 : index
    %c10 = arith.constant 10 : index
    %83 = memref.load %arg0[%c0_30, %c10] : memref<2x16xi32, #tpu.memory_space<smem>>
    %c1_31 = arith.constant 1 : index
    %c10_32 = arith.constant 10 : index
    %84 = memref.load %arg0[%c1_31, %c10_32] : memref<2x16xi32, #tpu.memory_space<smem>>
    %85 = vector.broadcast %84 : i32 to vector<8x8xi32>
    %86 = arith.cmpi eq, %0, %85 : vector<8x8xi32>
    %87 = vector.broadcast %83 : i32 to vector<8x8xi32>
    %88 = arith.cmpi eq, %1, %87 : vector<8x8xi32>
    %89 = arith.andi %86, %88 : vector<8x8xi1>
    %90 = arith.ori %82, %89 : vector<8x8xi1>
    %c0_33 = arith.constant 0 : index
    %c11 = arith.constant 11 : index
    %91 = memref.load %arg0[%c0_33, %c11] : memref<2x16xi32, #tpu.memory_space<smem>>
    %c1_34 = arith.constant 1 : index
    %c11_35 = arith.constant 11 : index
    %92 = memref.load %arg0[%c1_34, %c11_35] : memref<2x16xi32, #tpu.memory_space<smem>>
    %93 = vector.broadcast %92 : i32 to vector<8x8xi32>
    %94 = arith.cmpi eq, %0, %93 : vector<8x8xi32>
    %95 = vector.broadcast %91 : i32 to vector<8x8xi32>
    %96 = arith.cmpi eq, %1, %95 : vector<8x8xi32>
    %97 = arith.andi %94, %96 : vector<8x8xi1>
    %98 = arith.ori %90, %97 : vector<8x8xi1>
    %c0_36 = arith.constant 0 : index
    %c12 = arith.constant 12 : index
    %99 = memref.load %arg0[%c0_36, %c12] : memref<2x16xi32, #tpu.memory_space<smem>>
    %c1_37 = arith.constant 1 : index
    %c12_38 = arith.constant 12 : index
    %100 = memref.load %arg0[%c1_37, %c12_38] : memref<2x16xi32, #tpu.memory_space<smem>>
    %101 = vector.broadcast %100 : i32 to vector<8x8xi32>
    %102 = arith.cmpi eq, %0, %101 : vector<8x8xi32>
    %103 = vector.broadcast %99 : i32 to vector<8x8xi32>
    %104 = arith.cmpi eq, %1, %103 : vector<8x8xi32>
    %105 = arith.andi %102, %104 : vector<8x8xi1>
    %106 = arith.ori %98, %105 : vector<8x8xi1>
    %c0_39 = arith.constant 0 : index
    %c13 = arith.constant 13 : index
    %107 = memref.load %arg0[%c0_39, %c13] : memref<2x16xi32, #tpu.memory_space<smem>>
    %c1_40 = arith.constant 1 : index
    %c13_41 = arith.constant 13 : index
    %108 = memref.load %arg0[%c1_40, %c13_41] : memref<2x16xi32, #tpu.memory_space<smem>>
    %109 = vector.broadcast %108 : i32 to vector<8x8xi32>
    %110 = arith.cmpi eq, %0, %109 : vector<8x8xi32>
    %111 = vector.broadcast %107 : i32 to vector<8x8xi32>
    %112 = arith.cmpi eq, %1, %111 : vector<8x8xi32>
    %113 = arith.andi %110, %112 : vector<8x8xi1>
    %114 = arith.ori %106, %113 : vector<8x8xi1>
    %c0_42 = arith.constant 0 : index
    %c14 = arith.constant 14 : index
    %115 = memref.load %arg0[%c0_42, %c14] : memref<2x16xi32, #tpu.memory_space<smem>>
    %c1_43 = arith.constant 1 : index
    %c14_44 = arith.constant 14 : index
    %116 = memref.load %arg0[%c1_43, %c14_44] : memref<2x16xi32, #tpu.memory_space<smem>>
    %117 = vector.broadcast %116 : i32 to vector<8x8xi32>
    %118 = arith.cmpi eq, %0, %117 : vector<8x8xi32>
    %119 = vector.broadcast %115 : i32 to vector<8x8xi32>
    %120 = arith.cmpi eq, %1, %119 : vector<8x8xi32>
    %121 = arith.andi %118, %120 : vector<8x8xi1>
    %122 = arith.ori %114, %121 : vector<8x8xi1>
    %c0_45 = arith.constant 0 : index
    %c15 = arith.constant 15 : index
    %123 = memref.load %arg0[%c0_45, %c15] : memref<2x16xi32, #tpu.memory_space<smem>>
    %c1_46 = arith.constant 1 : index
    %c15_47 = arith.constant 15 : index
    %124 = memref.load %arg0[%c1_46, %c15_47] : memref<2x16xi32, #tpu.memory_space<smem>>
    %125 = vector.broadcast %124 : i32 to vector<8x8xi32>
    %126 = arith.cmpi eq, %0, %125 : vector<8x8xi32>
    %127 = vector.broadcast %123 : i32 to vector<8x8xi32>
    %128 = arith.cmpi eq, %1, %127 : vector<8x8xi32>
    %129 = arith.andi %126, %128 : vector<8x8xi1>
    %130 = arith.ori %122, %129 : vector<8x8xi1>
    %cst = arith.constant 0.000000e+00 : f32
    %cst_48 = arith.constant -1.000000e+30 : f32
    %131 = vector.broadcast %cst : f32 to vector<8x8xf32>
    %132 = vector.broadcast %cst_48 : f32 to vector<8x8xf32>
    %133 = arith.select %130, %131, %132 : vector<8x8xi1>, vector<8x8xf32>
    %c0_49 = arith.constant 0 : index
    %c0_50 = arith.constant 0 : index
    %134 = vector.load %arg1[%c0_49, %c0_50] : memref<8x16xf32, #tpu.memory_space<vmem>>, vector<8x16xf32>
    %c0_51 = arith.constant 0 : index
    %c0_52 = arith.constant 0 : index
    %135 = vector.load %arg2[%c0_51, %c0_52] : memref<16x96xf32, #tpu.memory_space<vmem>>, vector<16x96xf32>
    %c0_53 = arith.constant 0 : index
    %c0_54 = arith.constant 0 : index
    %136 = vector.load %arg3[%c0_53, %c0_54] : memref<96x3xf32, #tpu.memory_space<vmem>>, vector<96x3xf32>
    %c0_55 = arith.constant 0 : index
    %c0_56 = arith.constant 0 : index
    %137 = vector.load %arg4[%c0_55, %c0_56] : memref<96x3xf32, #tpu.memory_space<vmem>>, vector<96x3xf32>
    %c0_57 = arith.constant 0 : index
    %c0_58 = arith.constant 0 : index
    %138 = vector.load %arg5[%c0_57, %c0_58] : memref<1x96xf32, #tpu.memory_space<vmem>>, vector<1x96xf32>
    %cst_59 = arith.constant dense<0.000000e+00> : vector<8x96xf32>
    %139 = tpu.matmul %134, %135, %cst_59 {dimension_numbers = #tpu.dot_dimension_numbers<[1], [0], [0], [1], [0, 0, 1, 1], [], []>} : vector<8x16xf32>, vector<16x96xf32>, vector<8x96xf32> -> vector<8x96xf32>
    %cst_60 = arith.constant dense<0.000000e+00> : vector<8x3xf32>
    %140 = tpu.matmul %139, %136, %cst_60 {dimension_numbers = #tpu.dot_dimension_numbers<[1], [0], [0], [1], [0, 0, 1, 1], [], []>} : vector<8x96xf32>, vector<96x3xf32>, vector<8x3xf32> -> vector<8x3xf32>
    %cst_61 = arith.constant dense<0.000000e+00> : vector<3x8xf32>
    %141 = tpu.matmul %137, %139, %cst_61 {dimension_numbers = #tpu.dot_dimension_numbers<[0], [1], [1], [0], [0, 1, 1, 0], [], []>} : vector<96x3xf32>, vector<8x96xf32>, vector<3x8xf32> -> vector<3x8xf32>
    %142 = vector.extract_strided_slice %140 {offsets = [0, 0], sizes = [8, 1], strides = [1, 1]} : vector<8x3xf32> to vector<8x1xf32>
    %143 = vector.extract_strided_slice %141 {offsets = [0, 0], sizes = [1, 8], strides = [1, 1]} : vector<3x8xf32> to vector<1x8xf32>
    %144 = vector.broadcast %142 : vector<8x1xf32> to vector<8x8xf32>
    %145 = vector.broadcast %143 : vector<1x8xf32> to vector<8x8xf32>
    %146 = arith.addf %144, %145 : vector<8x8xf32>
    %cst_62 = arith.constant 0.000000e+00 : f32
    %147 = vector.broadcast %cst_62 : f32 to vector<8x8xf32>
    %148 = arith.cmpf ogt, %146, %147 : vector<8x8xf32>
    %cst_63 = arith.constant 2.000000e-01 : f32
    %149 = vector.broadcast %cst_63 : f32 to vector<8x8xf32>
    %150 = arith.mulf %149, %146 : vector<8x8xf32>
    %151 = arith.select %148, %146, %150 : vector<8x8xi1>, vector<8x8xf32>
    %152 = arith.addf %151, %133 : vector<8x8xf32>
    %cst_64 = arith.constant dense<0xFF800000> : vector<8xf32>
    %153 = vector.multi_reduction <maximumf>, %152, %cst_64 [1] : vector<8x8xf32> to vector<8xf32>
    %154 = vector.shape_cast %153 : vector<8xf32> to vector<8x1xf32>
    %155 = vector.broadcast %154 : vector<8x1xf32> to vector<8x8xf32>
    %156 = arith.subf %152, %155 : vector<8x8xf32>
    %157 = math.exp %156 : vector<8x8xf32>
    %cst_65 = arith.constant dense<0.000000e+00> : vector<8xf32>
    %158 = vector.multi_reduction <add>, %157, %cst_65 [1] : vector<8x8xf32> to vector<8xf32>
    %159 = vector.shape_cast %158 : vector<8xf32> to vector<8x1xf32>
    %160 = tpu.reciprocal %159 {approx = true} : vector<8x1xf32> -> vector<8x1xf32>
    %161 = vector.broadcast %160 : vector<8x1xf32> to vector<8x8xf32>
    %162 = arith.mulf %157, %161 : vector<8x8xf32>
    %163 = vector.extract_strided_slice %139 {offsets = [0, 0], sizes = [8, 32], strides = [1, 1]} : vector<8x96xf32> to vector<8x32xf32>
    %cst_66 = arith.constant dense<0.000000e+00> : vector<8x32xf32>
    %164 = tpu.matmul %162, %163, %cst_66 {dimension_numbers = #tpu.dot_dimension_numbers<[1], [0], [0], [1], [0, 0, 1, 1], [], []>} : vector<8x8xf32>, vector<8x32xf32>, vector<8x32xf32> -> vector<8x32xf32>
    %165 = vector.extract_strided_slice %140 {offsets = [0, 1], sizes = [8, 1], strides = [1, 1]} : vector<8x3xf32> to vector<8x1xf32>
    %166 = vector.extract_strided_slice %141 {offsets = [1, 0], sizes = [1, 8], strides = [1, 1]} : vector<3x8xf32> to vector<1x8xf32>
    %167 = vector.broadcast %165 : vector<8x1xf32> to vector<8x8xf32>
    %168 = vector.broadcast %166 : vector<1x8xf32> to vector<8x8xf32>
    %169 = arith.addf %167, %168 : vector<8x8xf32>
    %cst_67 = arith.constant 0.000000e+00 : f32
    %170 = vector.broadcast %cst_67 : f32 to vector<8x8xf32>
    %171 = arith.cmpf ogt, %169, %170 : vector<8x8xf32>
    %cst_68 = arith.constant 2.000000e-01 : f32
    %172 = vector.broadcast %cst_68 : f32 to vector<8x8xf32>
    %173 = arith.mulf %172, %169 : vector<8x8xf32>
    %174 = arith.select %171, %169, %173 : vector<8x8xi1>, vector<8x8xf32>
    %175 = arith.addf %174, %133 : vector<8x8xf32>
    %cst_69 = arith.constant dense<0xFF800000> : vector<8xf32>
    %176 = vector.multi_reduction <maximumf>, %175, %cst_69 [1] : vector<8x8xf32> to vector<8xf32>
    %177 = vector.shape_cast %176 : vector<8xf32> to vector<8x1xf32>
    %178 = vector.broadcast %177 : vector<8x1xf32> to vector<8x8xf32>
    %179 = arith.subf %175, %178 : vector<8x8xf32>
    %180 = math.exp %179 : vector<8x8xf32>
    %cst_70 = arith.constant dense<0.000000e+00> : vector<8xf32>
    %181 = vector.multi_reduction <add>, %180, %cst_70 [1] : vector<8x8xf32> to vector<8xf32>
    %182 = vector.shape_cast %181 : vector<8xf32> to vector<8x1xf32>
    %183 = tpu.reciprocal %182 {approx = true} : vector<8x1xf32> -> vector<8x1xf32>
    %184 = vector.broadcast %183 : vector<8x1xf32> to vector<8x8xf32>
    %185 = arith.mulf %180, %184 : vector<8x8xf32>
    %186 = vector.extract_strided_slice %139 {offsets = [0, 32], sizes = [8, 32], strides = [1, 1]} : vector<8x96xf32> to vector<8x32xf32>
    %cst_71 = arith.constant dense<0.000000e+00> : vector<8x32xf32>
    %187 = tpu.matmul %185, %186, %cst_71 {dimension_numbers = #tpu.dot_dimension_numbers<[1], [0], [0], [1], [0, 0, 1, 1], [], []>} : vector<8x8xf32>, vector<8x32xf32>, vector<8x32xf32> -> vector<8x32xf32>
    %188 = vector.extract_strided_slice %140 {offsets = [0, 2], sizes = [8, 1], strides = [1, 1]} : vector<8x3xf32> to vector<8x1xf32>
    %189 = vector.extract_strided_slice %141 {offsets = [2, 0], sizes = [1, 8], strides = [1, 1]} : vector<3x8xf32> to vector<1x8xf32>
    %190 = vector.broadcast %188 : vector<8x1xf32> to vector<8x8xf32>
    %191 = vector.broadcast %189 : vector<1x8xf32> to vector<8x8xf32>
    %192 = arith.addf %190, %191 : vector<8x8xf32>
    %cst_72 = arith.constant 0.000000e+00 : f32
    %193 = vector.broadcast %cst_72 : f32 to vector<8x8xf32>
    %194 = arith.cmpf ogt, %192, %193 : vector<8x8xf32>
    %cst_73 = arith.constant 2.000000e-01 : f32
    %195 = vector.broadcast %cst_73 : f32 to vector<8x8xf32>
    %196 = arith.mulf %195, %192 : vector<8x8xf32>
    %197 = arith.select %194, %192, %196 : vector<8x8xi1>, vector<8x8xf32>
    %198 = arith.addf %197, %133 : vector<8x8xf32>
    %cst_74 = arith.constant dense<0xFF800000> : vector<8xf32>
    %199 = vector.multi_reduction <maximumf>, %198, %cst_74 [1] : vector<8x8xf32> to vector<8xf32>
    %200 = vector.shape_cast %199 : vector<8xf32> to vector<8x1xf32>
    %201 = vector.broadcast %200 : vector<8x1xf32> to vector<8x8xf32>
    %202 = arith.subf %198, %201 : vector<8x8xf32>
    %203 = math.exp %202 : vector<8x8xf32>
    %cst_75 = arith.constant dense<0.000000e+00> : vector<8xf32>
    %204 = vector.multi_reduction <add>, %203, %cst_75 [1] : vector<8x8xf32> to vector<8xf32>
    %205 = vector.shape_cast %204 : vector<8xf32> to vector<8x1xf32>
    %206 = tpu.reciprocal %205 {approx = true} : vector<8x1xf32> -> vector<8x1xf32>
    %207 = vector.broadcast %206 : vector<8x1xf32> to vector<8x8xf32>
    %208 = arith.mulf %203, %207 : vector<8x8xf32>
    %209 = vector.extract_strided_slice %139 {offsets = [0, 64], sizes = [8, 32], strides = [1, 1]} : vector<8x96xf32> to vector<8x32xf32>
    %cst_76 = arith.constant dense<0.000000e+00> : vector<8x32xf32>
    %210 = tpu.matmul %208, %209, %cst_76 {dimension_numbers = #tpu.dot_dimension_numbers<[1], [0], [0], [1], [0, 0, 1, 1], [], []>} : vector<8x8xf32>, vector<8x32xf32>, vector<8x32xf32> -> vector<8x32xf32>
    %211 = tpu.concatenate %164, %187, %210 in 1 : vector<8x32xf32>, vector<8x32xf32>, vector<8x32xf32> -> vector<8x96xf32>
    %212 = vector.broadcast %138 : vector<1x96xf32> to vector<8x96xf32>
    %213 = arith.addf %211, %212 : vector<8x96xf32>
    %cst_77 = arith.constant 0.000000e+00 : f32
    %214 = vector.broadcast %cst_77 : f32 to vector<8x96xf32>
    %215 = arith.maximumf %213, %214 : vector<8x96xf32>
    %c0_78 = arith.constant 0 : index
    %c0_79 = arith.constant 0 : index
    %216 = vector.load %arg6[%c0_78, %c0_79] : memref<96x96xf32, #tpu.memory_space<vmem>>, vector<96x96xf32>
    %c0_80 = arith.constant 0 : index
    %c0_81 = arith.constant 0 : index
    %217 = vector.load %arg7[%c0_80, %c0_81] : memref<96x3xf32, #tpu.memory_space<vmem>>, vector<96x3xf32>
    %c0_82 = arith.constant 0 : index
    %c0_83 = arith.constant 0 : index
    %218 = vector.load %arg8[%c0_82, %c0_83] : memref<96x3xf32, #tpu.memory_space<vmem>>, vector<96x3xf32>
    %c0_84 = arith.constant 0 : index
    %c0_85 = arith.constant 0 : index
    %219 = vector.load %arg9[%c0_84, %c0_85] : memref<1x96xf32, #tpu.memory_space<vmem>>, vector<1x96xf32>
    %cst_86 = arith.constant dense<0.000000e+00> : vector<8x96xf32>
    %220 = tpu.matmul %215, %216, %cst_86 {dimension_numbers = #tpu.dot_dimension_numbers<[1], [0], [0], [1], [0, 0, 1, 1], [], []>} : vector<8x96xf32>, vector<96x96xf32>, vector<8x96xf32> -> vector<8x96xf32>
    %cst_87 = arith.constant dense<0.000000e+00> : vector<8x3xf32>
    %221 = tpu.matmul %220, %217, %cst_87 {dimension_numbers = #tpu.dot_dimension_numbers<[1], [0], [0], [1], [0, 0, 1, 1], [], []>} : vector<8x96xf32>, vector<96x3xf32>, vector<8x3xf32> -> vector<8x3xf32>
    %cst_88 = arith.constant dense<0.000000e+00> : vector<3x8xf32>
    %222 = tpu.matmul %218, %220, %cst_88 {dimension_numbers = #tpu.dot_dimension_numbers<[0], [1], [1], [0], [0, 1, 1, 0], [], []>} : vector<96x3xf32>, vector<8x96xf32>, vector<3x8xf32> -> vector<3x8xf32>
    %223 = vector.extract_strided_slice %221 {offsets = [0, 0], sizes = [8, 1], strides = [1, 1]} : vector<8x3xf32> to vector<8x1xf32>
    %224 = vector.extract_strided_slice %222 {offsets = [0, 0], sizes = [1, 8], strides = [1, 1]} : vector<3x8xf32> to vector<1x8xf32>
    %225 = vector.broadcast %223 : vector<8x1xf32> to vector<8x8xf32>
    %226 = vector.broadcast %224 : vector<1x8xf32> to vector<8x8xf32>
    %227 = arith.addf %225, %226 : vector<8x8xf32>
    %cst_89 = arith.constant 0.000000e+00 : f32
    %228 = vector.broadcast %cst_89 : f32 to vector<8x8xf32>
    %229 = arith.cmpf ogt, %227, %228 : vector<8x8xf32>
    %cst_90 = arith.constant 2.000000e-01 : f32
    %230 = vector.broadcast %cst_90 : f32 to vector<8x8xf32>
    %231 = arith.mulf %230, %227 : vector<8x8xf32>
    %232 = arith.select %229, %227, %231 : vector<8x8xi1>, vector<8x8xf32>
    %233 = arith.addf %232, %133 : vector<8x8xf32>
    %cst_91 = arith.constant dense<0xFF800000> : vector<8xf32>
    %234 = vector.multi_reduction <maximumf>, %233, %cst_91 [1] : vector<8x8xf32> to vector<8xf32>
    %235 = vector.shape_cast %234 : vector<8xf32> to vector<8x1xf32>
    %236 = vector.broadcast %235 : vector<8x1xf32> to vector<8x8xf32>
    %237 = arith.subf %233, %236 : vector<8x8xf32>
    %238 = math.exp %237 : vector<8x8xf32>
    %cst_92 = arith.constant dense<0.000000e+00> : vector<8xf32>
    %239 = vector.multi_reduction <add>, %238, %cst_92 [1] : vector<8x8xf32> to vector<8xf32>
    %240 = vector.shape_cast %239 : vector<8xf32> to vector<8x1xf32>
    %241 = tpu.reciprocal %240 {approx = true} : vector<8x1xf32> -> vector<8x1xf32>
    %242 = vector.broadcast %241 : vector<8x1xf32> to vector<8x8xf32>
    %243 = arith.mulf %238, %242 : vector<8x8xf32>
    %244 = vector.extract_strided_slice %220 {offsets = [0, 0], sizes = [8, 32], strides = [1, 1]} : vector<8x96xf32> to vector<8x32xf32>
    %cst_93 = arith.constant dense<0.000000e+00> : vector<8x32xf32>
    %245 = tpu.matmul %243, %244, %cst_93 {dimension_numbers = #tpu.dot_dimension_numbers<[1], [0], [0], [1], [0, 0, 1, 1], [], []>} : vector<8x8xf32>, vector<8x32xf32>, vector<8x32xf32> -> vector<8x32xf32>
    %246 = vector.extract_strided_slice %221 {offsets = [0, 1], sizes = [8, 1], strides = [1, 1]} : vector<8x3xf32> to vector<8x1xf32>
    %247 = vector.extract_strided_slice %222 {offsets = [1, 0], sizes = [1, 8], strides = [1, 1]} : vector<3x8xf32> to vector<1x8xf32>
    %248 = vector.broadcast %246 : vector<8x1xf32> to vector<8x8xf32>
    %249 = vector.broadcast %247 : vector<1x8xf32> to vector<8x8xf32>
    %250 = arith.addf %248, %249 : vector<8x8xf32>
    %cst_94 = arith.constant 0.000000e+00 : f32
    %251 = vector.broadcast %cst_94 : f32 to vector<8x8xf32>
    %252 = arith.cmpf ogt, %250, %251 : vector<8x8xf32>
    %cst_95 = arith.constant 2.000000e-01 : f32
    %253 = vector.broadcast %cst_95 : f32 to vector<8x8xf32>
    %254 = arith.mulf %253, %250 : vector<8x8xf32>
    %255 = arith.select %252, %250, %254 : vector<8x8xi1>, vector<8x8xf32>
    %256 = arith.addf %255, %133 : vector<8x8xf32>
    %cst_96 = arith.constant dense<0xFF800000> : vector<8xf32>
    %257 = vector.multi_reduction <maximumf>, %256, %cst_96 [1] : vector<8x8xf32> to vector<8xf32>
    %258 = vector.shape_cast %257 : vector<8xf32> to vector<8x1xf32>
    %259 = vector.broadcast %258 : vector<8x1xf32> to vector<8x8xf32>
    %260 = arith.subf %256, %259 : vector<8x8xf32>
    %261 = math.exp %260 : vector<8x8xf32>
    %cst_97 = arith.constant dense<0.000000e+00> : vector<8xf32>
    %262 = vector.multi_reduction <add>, %261, %cst_97 [1] : vector<8x8xf32> to vector<8xf32>
    %263 = vector.shape_cast %262 : vector<8xf32> to vector<8x1xf32>
    %264 = tpu.reciprocal %263 {approx = true} : vector<8x1xf32> -> vector<8x1xf32>
    %265 = vector.broadcast %264 : vector<8x1xf32> to vector<8x8xf32>
    %266 = arith.mulf %261, %265 : vector<8x8xf32>
    %267 = vector.extract_strided_slice %220 {offsets = [0, 32], sizes = [8, 32], strides = [1, 1]} : vector<8x96xf32> to vector<8x32xf32>
    %cst_98 = arith.constant dense<0.000000e+00> : vector<8x32xf32>
    %268 = tpu.matmul %266, %267, %cst_98 {dimension_numbers = #tpu.dot_dimension_numbers<[1], [0], [0], [1], [0, 0, 1, 1], [], []>} : vector<8x8xf32>, vector<8x32xf32>, vector<8x32xf32> -> vector<8x32xf32>
    %269 = vector.extract_strided_slice %221 {offsets = [0, 2], sizes = [8, 1], strides = [1, 1]} : vector<8x3xf32> to vector<8x1xf32>
    %270 = vector.extract_strided_slice %222 {offsets = [2, 0], sizes = [1, 8], strides = [1, 1]} : vector<3x8xf32> to vector<1x8xf32>
    %271 = vector.broadcast %269 : vector<8x1xf32> to vector<8x8xf32>
    %272 = vector.broadcast %270 : vector<1x8xf32> to vector<8x8xf32>
    %273 = arith.addf %271, %272 : vector<8x8xf32>
    %cst_99 = arith.constant 0.000000e+00 : f32
    %274 = vector.broadcast %cst_99 : f32 to vector<8x8xf32>
    %275 = arith.cmpf ogt, %273, %274 : vector<8x8xf32>
    %cst_100 = arith.constant 2.000000e-01 : f32
    %276 = vector.broadcast %cst_100 : f32 to vector<8x8xf32>
    %277 = arith.mulf %276, %273 : vector<8x8xf32>
    %278 = arith.select %275, %273, %277 : vector<8x8xi1>, vector<8x8xf32>
    %279 = arith.addf %278, %133 : vector<8x8xf32>
    %cst_101 = arith.constant dense<0xFF800000> : vector<8xf32>
    %280 = vector.multi_reduction <maximumf>, %279, %cst_101 [1] : vector<8x8xf32> to vector<8xf32>
    %281 = vector.shape_cast %280 : vector<8xf32> to vector<8x1xf32>
    %282 = vector.broadcast %281 : vector<8x1xf32> to vector<8x8xf32>
    %283 = arith.subf %279, %282 : vector<8x8xf32>
    %284 = math.exp %283 : vector<8x8xf32>
    %cst_102 = arith.constant dense<0.000000e+00> : vector<8xf32>
    %285 = vector.multi_reduction <add>, %284, %cst_102 [1] : vector<8x8xf32> to vector<8xf32>
    %286 = vector.shape_cast %285 : vector<8xf32> to vector<8x1xf32>
    %287 = tpu.reciprocal %286 {approx = true} : vector<8x1xf32> -> vector<8x1xf32>
    %288 = vector.broadcast %287 : vector<8x1xf32> to vector<8x8xf32>
    %289 = arith.mulf %284, %288 : vector<8x8xf32>
    %290 = vector.extract_strided_slice %220 {offsets = [0, 64], sizes = [8, 32], strides = [1, 1]} : vector<8x96xf32> to vector<8x32xf32>
    %cst_103 = arith.constant dense<0.000000e+00> : vector<8x32xf32>
    %291 = tpu.matmul %289, %290, %cst_103 {dimension_numbers = #tpu.dot_dimension_numbers<[1], [0], [0], [1], [0, 0, 1, 1], [], []>} : vector<8x8xf32>, vector<8x32xf32>, vector<8x32xf32> -> vector<8x32xf32>
    %292 = tpu.concatenate %245, %268, %291 in 1 : vector<8x32xf32>, vector<8x32xf32>, vector<8x32xf32> -> vector<8x96xf32>
    %293 = vector.broadcast %219 : vector<1x96xf32> to vector<8x96xf32>
    %294 = arith.addf %292, %293 : vector<8x96xf32>
    %cst_104 = arith.constant 0.000000e+00 : f32
    %295 = vector.broadcast %cst_104 : f32 to vector<8x96xf32>
    %296 = arith.maximumf %294, %295 : vector<8x96xf32>
    %c0_105 = arith.constant 0 : index
    %c0_106 = arith.constant 0 : index
    %297 = vector.load %arg10[%c0_105, %c0_106] : memref<96x32xf32, #tpu.memory_space<vmem>>, vector<96x32xf32>
    %c0_107 = arith.constant 0 : index
    %c0_108 = arith.constant 0 : index
    %298 = vector.load %arg11[%c0_107, %c0_108] : memref<32x1xf32, #tpu.memory_space<vmem>>, vector<32x1xf32>
    %c0_109 = arith.constant 0 : index
    %c0_110 = arith.constant 0 : index
    %299 = vector.load %arg12[%c0_109, %c0_110] : memref<32x1xf32, #tpu.memory_space<vmem>>, vector<32x1xf32>
    %c0_111 = arith.constant 0 : index
    %c0_112 = arith.constant 0 : index
    %300 = vector.load %arg13[%c0_111, %c0_112] : memref<1x32xf32, #tpu.memory_space<vmem>>, vector<1x32xf32>
    %cst_113 = arith.constant dense<0.000000e+00> : vector<8x32xf32>
    %301 = tpu.matmul %296, %297, %cst_113 {dimension_numbers = #tpu.dot_dimension_numbers<[1], [0], [0], [1], [0, 0, 1, 1], [], []>} : vector<8x96xf32>, vector<96x32xf32>, vector<8x32xf32> -> vector<8x32xf32>
    %cst_114 = arith.constant dense<0.000000e+00> : vector<8x1xf32>
    %302 = tpu.matmul %301, %298, %cst_114 {dimension_numbers = #tpu.dot_dimension_numbers<[1], [0], [0], [1], [0, 0, 1, 1], [], []>} : vector<8x32xf32>, vector<32x1xf32>, vector<8x1xf32> -> vector<8x1xf32>
    %cst_115 = arith.constant dense<0.000000e+00> : vector<1x8xf32>
    %303 = tpu.matmul %299, %301, %cst_115 {dimension_numbers = #tpu.dot_dimension_numbers<[0], [1], [1], [0], [0, 1, 1, 0], [], []>} : vector<32x1xf32>, vector<8x32xf32>, vector<1x8xf32> -> vector<1x8xf32>
    %304 = vector.broadcast %302 : vector<8x1xf32> to vector<8x8xf32>
    %305 = vector.broadcast %303 : vector<1x8xf32> to vector<8x8xf32>
    %306 = arith.addf %304, %305 : vector<8x8xf32>
    %cst_116 = arith.constant 0.000000e+00 : f32
    %307 = vector.broadcast %cst_116 : f32 to vector<8x8xf32>
    %308 = arith.cmpf ogt, %306, %307 : vector<8x8xf32>
    %cst_117 = arith.constant 2.000000e-01 : f32
    %309 = vector.broadcast %cst_117 : f32 to vector<8x8xf32>
    %310 = arith.mulf %309, %306 : vector<8x8xf32>
    %311 = arith.select %308, %306, %310 : vector<8x8xi1>, vector<8x8xf32>
    %312 = arith.addf %311, %133 : vector<8x8xf32>
    %cst_118 = arith.constant dense<0xFF800000> : vector<8xf32>
    %313 = vector.multi_reduction <maximumf>, %312, %cst_118 [1] : vector<8x8xf32> to vector<8xf32>
    %314 = vector.shape_cast %313 : vector<8xf32> to vector<8x1xf32>
    %315 = vector.broadcast %314 : vector<8x1xf32> to vector<8x8xf32>
    %316 = arith.subf %312, %315 : vector<8x8xf32>
    %317 = math.exp %316 : vector<8x8xf32>
    %cst_119 = arith.constant dense<0.000000e+00> : vector<8xf32>
    %318 = vector.multi_reduction <add>, %317, %cst_119 [1] : vector<8x8xf32> to vector<8xf32>
    %319 = vector.shape_cast %318 : vector<8xf32> to vector<8x1xf32>
    %320 = tpu.reciprocal %319 {approx = true} : vector<8x1xf32> -> vector<8x1xf32>
    %321 = vector.broadcast %320 : vector<8x1xf32> to vector<8x8xf32>
    %322 = arith.mulf %317, %321 : vector<8x8xf32>
    %cst_120 = arith.constant dense<0.000000e+00> : vector<8x32xf32>
    %323 = tpu.matmul %322, %301, %cst_120 {dimension_numbers = #tpu.dot_dimension_numbers<[1], [0], [0], [1], [0, 0, 1, 1], [], []>} : vector<8x8xf32>, vector<8x32xf32>, vector<8x32xf32> -> vector<8x32xf32>
    %cst_121 = arith.constant 1.000000e+00 : f32
    %324 = vector.broadcast %cst_121 : f32 to vector<8x32xf32>
    %325 = arith.mulf %323, %324 : vector<8x32xf32>
    %326 = vector.broadcast %300 : vector<1x32xf32> to vector<8x32xf32>
    %327 = arith.addf %325, %326 : vector<8x32xf32>
    %c0_122 = arith.constant 0 : index
    %c0_123 = arith.constant 0 : index
    %328 = vector.load %arg14[%c0_122, %c0_123] : memref<32x4xf32, #tpu.memory_space<vmem>>, vector<32x4xf32>
    %cst_124 = arith.constant dense<0.000000e+00> : vector<8x4xf32>
    %329 = tpu.matmul %327, %328, %cst_124 {dimension_numbers = #tpu.dot_dimension_numbers<[1], [0], [0], [1], [0, 0, 1, 1], [], []>} : vector<8x32xf32>, vector<32x4xf32>, vector<8x4xf32> -> vector<8x4xf32>
    %c0_125 = arith.constant 0 : index
    %c0_126 = arith.constant 0 : index
    %330 = vector.load %arg15[%c0_125, %c0_126] : memref<1x4xf32, #tpu.memory_space<vmem>>, vector<1x4xf32>
    %331 = vector.broadcast %330 : vector<1x4xf32> to vector<8x4xf32>
    %332 = arith.addf %329, %331 : vector<8x4xf32>
    %c0_127 = arith.constant 0 : index
    %c0_128 = arith.constant 0 : index
    %333 = vector.load %arg16[%c0_127, %c0_128] : memref<8x4xf32, #tpu.memory_space<vmem>>, vector<8x4xf32>
    tpu.vector_store %arg16[%c0_127, %c0_128], %332 {strides = array<i32>} : memref<8x4xf32, #tpu.memory_space<vmem>>, vector<8x4xf32>,
    return
  }
}

</mosaic_0001>

<llo_original>
// kernel: tpu_custom_call.1
$region0: #{tpu_custom_call.1}
  #allocation0 [shape = 'u32[]', space=smem, size = 0x4, offset = 0x4, fixed_abs, tag = 'smem constant byte address 0x4 - core index']
  #allocation1 [shape = 'u32[144,128]{1,0:T(1,128)}', space=vmem, size = 0x12000, scoped, tag = 'internal scratch']
  %s0 = inlined_call_operand.vmem [shape: s32[2,16], index: 0, kind: input, shape index: {}]
  %s1 = inlined_call_operand.vmem [shape: f32[8,16], index: 1, kind: input, shape index: {}]
  %s2 = inlined_call_operand.vmem [shape: f32[16,96], index: 2, kind: input, shape index: {}]
  %s3 = inlined_call_operand.vmem [shape: f32[96,3], index: 3, kind: input, shape index: {}]
  %s4 = inlined_call_operand.vmem [shape: f32[96,3], index: 4, kind: input, shape index: {}]
  %s5 = inlined_call_operand.vmem [shape: f32[1,96], index: 5, kind: input, shape index: {}]
  %s6 = inlined_call_operand.vmem [shape: f32[96,96], index: 6, kind: input, shape index: {}]
  %s7 = inlined_call_operand.vmem [shape: f32[96,3], index: 7, kind: input, shape index: {}]
  %s8 = inlined_call_operand.vmem [shape: f32[96,3], index: 8, kind: input, shape index: {}]
  %s9 = inlined_call_operand.vmem [shape: f32[1,96], index: 9, kind: input, shape index: {}]
  %s10 = inlined_call_operand.vmem [shape: f32[96,32], index: 10, kind: input, shape index: {}]
  %s11 = inlined_call_operand.vmem [shape: f32[32,1], index: 11, kind: input, shape index: {}]
  %s12 = inlined_call_operand.vmem [shape: f32[32,1], index: 12, kind: input, shape index: {}]
  %s13 = inlined_call_operand.vmem [shape: f32[1,32], index: 13, kind: input, shape index: {}]
  %s14 = inlined_call_operand.vmem [shape: f32[32,4], index: 14, kind: input, shape index: {}]
  %s15 = inlined_call_operand.vmem [shape: f32[1,4], index: 15, kind: input, shape index: {}]
  %s16 = inlined_call_operand.vmem [shape: f32[8,4], index: 16, kind: output, shape index: {}]
  %s17 = sld [smem:[#allocation0]]
  $region78: #{tpu_custom_call.1} parent=0
    _
  %s19 = ssub.s32 1, %s17
  %s20 = scalar_select 0, %s19, %s17
  $region1: #{tpu_custom_call.1} parent=0
    #allocation2 [shape = 'u8[1024]{0}', space=smem, size = 0x400, scoped, tag = 'input window, operand 0, single buffered']
    #allocation3 [shape = 's32[1]{0}', space=sflag, size = 0x4, scoped, tag = 'scoped memory for tpu_custom_call.1']
    %21 = vsyncpa [#allocation3], 0
    // Predicated region
    $region2: #{tpu_custom_call.1} parent=1 // pred_check
      _
    $region3: #{tpu_custom_call.1} parent=1 // pred_check_branch
      %23 = sbr.rel (0) target = $region5
    $region4: #{tpu_custom_call.1} parent=1 // pred_region
      %s25 = ssub.s32 32, 32
      %26 = vsyncadd [#allocation3], %s25
      %s28 = sshll.u32 %s0, 4
      %s29 = int_to_ptr.vmem [resolvable:$true] %s28
      %31 = dma.vmem_to_smem %s29, 32, [#allocation2], [#allocation3]
    $region5: #{tpu_custom_call.1} parent=1 // pred_fallthru
      _
    // Predicated region
    $region6: #{tpu_custom_call.1} parent=1 // pred_check
      _
    $region7: #{tpu_custom_call.1} parent=1 // pred_check_branch
      %33 = sbr.rel (0) target = $region9
    $region8: #{tpu_custom_call.1} parent=1 // pred_region
      _
    $region9: #{tpu_custom_call.1} parent=1 // pred_fallthru
      _
    // Predicated region
    $region10: #{tpu_custom_call.1} parent=1 // pred_check
      _
    $region11: #{tpu_custom_call.1} parent=1 // pred_check_branch
      %35 = sbr.rel (0) target = $region13
    $region12: #{tpu_custom_call.1} parent=1 // pred_region
      _
    $region13: #{tpu_custom_call.1} parent=1 // pred_fallthru
      _
    // Predicated region
    $region14: #{tpu_custom_call.1} parent=1 // pred_check
      _
    $region15: #{tpu_custom_call.1} parent=1 // pred_check_branch
      %37 = sbr.rel (0) target = $region17
    $region16: #{tpu_custom_call.1} parent=1 // pred_region
      _
    $region17: #{tpu_custom_call.1} parent=1 // pred_fallthru
      _
    // Predicated region
    $region18: #{tpu_custom_call.1} parent=1 // pred_check
      _
    $region19: #{tpu_custom_call.1} parent=1 // pred_check_branch
      %39 = sbr.rel (0) target = $region21
    $region20: #{tpu_custom_call.1} parent=1 // pred_region
      _
    $region21: #{tpu_custom_call.1} parent=1 // pred_fallthru
      _
    // Predicated region
    $region22: #{tpu_custom_call.1} parent=1 // pred_check
      _
    $region23: #{tpu_custom_call.1} parent=1 // pred_check_branch
      %41 = sbr.rel (0) target = $region25
    $region24: #{tpu_custom_call.1} parent=1 // pred_region
      _
    $region25: #{tpu_custom_call.1} parent=1 // pred_fallthru
      _
    // Predicated region
    $region26: #{tpu_custom_call.1} parent=1 // pred_check
      _
    $region27: #{tpu_custom_call.1} parent=1 // pred_check_branch
      %43 = sbr.rel (0) target = $region29
    $region28: #{tpu_custom_call.1} parent=1 // pred_region
      _
    $region29: #{tpu_custom_call.1} parent=1 // pred_fallthru
      _
    // Predicated region
    $region30: #{tpu_custom_call.1} parent=1 // pred_check
      _
    $region31: #{tpu_custom_call.1} parent=1 // pred_check_branch
      %45 = sbr.rel (0) target = $region33
    $region32: #{tpu_custom_call.1} parent=1 // pred_region
      _
    $region33: #{tpu_custom_call.1} parent=1 // pred_fallthru
      _
    // Predicated region
    $region34: #{tpu_custom_call.1} parent=1 // pred_check
      _
    $region35: #{tpu_custom_call.1} parent=1 // pred_check_branch
      %47 = sbr.rel (0) target = $region37
    $region36: #{tpu_custom_call.1} parent=1 // pred_region
      _
    $region37: #{tpu_custom_call.1} parent=1 // pred_fallthru
      _
    // Predicated region
    $region38: #{tpu_custom_call.1} parent=1 // pred_check
      _
    $region39: #{tpu_custom_call.1} parent=1 // pred_check_branch
      %49 = sbr.rel (0) target = $region41
    $region40: #{tpu_custom_call.1} parent=1 // pred_region
      _
    $region41: #{tpu_custom_call.1} parent=1 // pred_fallthru
      _
    // Predicated region
    $region42: #{tpu_custom_call.1} parent=1 // pred_check
      _
    $region43: #{tpu_custom_call.1} parent=1 // pred_check_branch
      %51 = sbr.rel (0) target = $region45
    $region44: #{tpu_custom_call.1} parent=1 // pred_region
      _
    $region45: #{tpu_custom_call.1} parent=1 // pred_fallthru
      _
    // Predicated region
    $region46: #{tpu_custom_call.1} parent=1 // pred_check
      _
    $region47: #{tpu_custom_call.1} parent=1 // pred_check_branch
      %53 = sbr.rel (0) target = $region49
    $region48: #{tpu_custom_call.1} parent=1 // pred_region
      _
    $region49: #{tpu_custom_call.1} parent=1 // pred_fallthru
      _
    // Predicated region
    $region50: #{tpu_custom_call.1} parent=1 // pred_check
      _
    $region51: #{tpu_custom_call.1} parent=1 // pred_check_branch
      %55 = sbr.rel (0) target = $region53
    $region52: #{tpu_custom_call.1} parent=1 // pred_region
      _
    $region53: #{tpu_custom_call.1} parent=1 // pred_fallthru
      _
    // Predicated region
    $region54: #{tpu_custom_call.1} parent=1 // pred_check
      _
    $region55: #{tpu_custom_call.1} parent=1 // pred_check_branch
      %57 = sbr.rel (0) target = $region57
    $region56: #{tpu_custom_call.1} parent=1 // pred_region
      _
    $region57: #{tpu_custom_call.1} parent=1 // pred_fallthru
      _
    // Predicated region
    $region58: #{tpu_custom_call.1} parent=1 // pred_check
      _
    $region59: #{tpu_custom_call.1} parent=1 // pred_check_branch
      %59 = sbr.rel (0) target = $region61
    $region60: #{tpu_custom_call.1} parent=1 // pred_region
      _
    $region61: #{tpu_custom_call.1} parent=1 // pred_fallthru
      _
    // Predicated region
    $region62: #{tpu_custom_call.1} parent=1 // pred_check
      _
    $region63: #{tpu_custom_call.1} parent=1 // pred_check_branch
      %61 = sbr.rel (0) target = $region65
    $region64: #{tpu_custom_call.1} parent=1 // pred_region
      _
    $region65: #{tpu_custom_call.1} parent=1 // pred_fallthru
      _
    // Predicated region
    $region66: #{tpu_custom_call.1} parent=1 // pred_check
      _
    $region67: #{tpu_custom_call.1} parent=1 // pred_check_branch
      %63 = sbr.rel (0) target = $region69
    $region68: #{tpu_custom_call.1} parent=1 // pred_region
      %64 = dma.done [#allocation3], 32
    $region69: #{tpu_custom_call.1} parent=1 // pred_fallthru
      _
    %65 = sfence
    %v66 = vlaneseq
    %v67 = vshrl.u32 %v66, 7
    %v68 = vlaneseq
    %v69 = vand.u32 %v68, 127
    %vm70 = vcmp.eq.s32.totalorder %v67, %v69
    %s71 = sld [smem:[#allocation2]]
    %s72 = sld [smem:[#allocation2 + $0x80]]
    %v73 = vstv %s72
    %vm74 = vcmp.eq.s32.totalorder %v67, %v73
    %v75 = vstv %s71
    %vm76 = vcmp.eq.s32.totalorder %v69, %v75
    %vm77 = vmand %vm74, %vm76
    %vm78 = vmor %vm70, %vm77
    %s79 = sld [smem:[#allocation2 + $0x1]]
    %s80 = sld [smem:[#allocation2 + $0x81]]
    %v81 = vstv %s80
    %vm82 = vcmp.eq.s32.totalorder %v67, %v81
    %v83 = vstv %s79
    %vm84 = vcmp.eq.s32.totalorder %v69, %v83
    %vm85 = vmand %vm82, %vm84
    %vm86 = vmor %vm78, %vm85
    %s87 = sld [smem:[#allocation2 + $0x2]]
    %s88 = sld [smem:[#allocation2 + $0x82]]
    %v89 = vstv %s88
    %vm90 = vcmp.eq.s32.totalorder %v67, %v89
    %v91 = vstv %s87
    %vm92 = vcmp.eq.s32.totalorder %v69, %v91
    %vm93 = vmand %vm90, %vm92
    %vm94 = vmor %vm86, %vm93
    %s95 = sld [smem:[#allocation2 + $0x3]]
    %s96 = sld [smem:[#allocation2 + $0x83]]
    %v97 = vstv %s96
    %vm98 = vcmp.eq.s32.totalorder %v67, %v97
    %v99 = vstv %s95
    %vm100 = vcmp.eq.s32.totalorder %v69, %v99
    %vm101 = vmand %vm98, %vm100
    %vm102 = vmor %vm94, %vm101
    %s103 = sld [smem:[#allocation2 + $0x4]]
    %s104 = sld [smem:[#allocation2 + $0x84]]
    %v105 = vstv %s104
    %vm106 = vcmp.eq.s32.totalorder %v67, %v105
    %v107 = vstv %s103
    %vm108 = vcmp.eq.s32.totalorder %v69, %v107
    %vm109 = vmand %vm106, %vm108
    %vm110 = vmor %vm102, %vm109
    %s111 = sld [smem:[#allocation2 + $0x5]]
    %s112 = sld [smem:[#allocation2 + $0x85]]
    %v113 = vstv %s112
    %vm114 = vcmp.eq.s32.totalorder %v67, %v113
    %v115 = vstv %s111
    %vm116 = vcmp.eq.s32.totalorder %v69, %v115
    %vm117 = vmand %vm114, %vm116
    %vm118 = vmor %vm110, %vm117
    %s119 = sld [smem:[#allocation2 + $0x6]]
    %s120 = sld [smem:[#allocation2 + $0x86]]
    %v121 = vstv %s120
    %vm122 = vcmp.eq.s32.totalorder %v67, %v121
    %v123 = vstv %s119
    %vm124 = vcmp.eq.s32.totalorder %v69, %v123
    %vm125 = vmand %vm122, %vm124
    %vm126 = vmor %vm118, %vm125
    %s127 = sld [smem:[#allocation2 + $0x7]]
    %s128 = sld [smem:[#allocation2 + $0x87]]
    %v129 = vstv %s128
    %vm130 = vcmp.eq.s32.totalorder %v67, %v129
    %v131 = vstv %s127
    %vm132 = vcmp.eq.s32.totalorder %v69, %v131
    %vm133 = vmand %vm130, %vm132
    %vm134 = vmor %vm126, %vm133
    %s135 = sld [smem:[#allocation2 + $0x8]]
    %s136 = sld [smem:[#allocation2 + $0x88]]
    %v137 = vstv %s136
    %vm138 = vcmp.eq.s32.totalorder %v67, %v137
    %v139 = vstv %s135
    %vm140 = vcmp.eq.s32.totalorder %v69, %v139
    %vm141 = vmand %vm138, %vm140
    %vm142 = vmor %vm134, %vm141
    %s143 = sld [smem:[#allocation2 + $0x9]]
    %s144 = sld [smem:[#allocation2 + $0x89]]
    %v145 = vstv %s144
    %vm146 = vcmp.eq.s32.totalorder %v67, %v145
    %v147 = vstv %s143
    %vm148 = vcmp.eq.s32.totalorder %v69, %v147
    %vm149 = vmand %vm146, %vm148
    %vm150 = vmor %vm142, %vm149
    %s151 = sld [smem:[#allocation2 + $0xa]]
    %s152 = sld [smem:[#allocation2 + $0x8a]]
    %v153 = vstv %s152
    %vm154 = vcmp.eq.s32.totalorder %v67, %v153
    %v155 = vstv %s151
    %vm156 = vcmp.eq.s32.totalorder %v69, %v155
    %vm157 = vmand %vm154, %vm156
    %vm158 = vmor %vm150, %vm157
    %s159 = sld [smem:[#allocation2 + $0xb]]
    %s160 = sld [smem:[#allocation2 + $0x8b]]
    %v161 = vstv %s160
    %vm162 = vcmp.eq.s32.totalorder %v67, %v161
    %v163 = vstv %s159
    %vm164 = vcmp.eq.s32.totalorder %v69, %v163
    %vm165 = vmand %vm162, %vm164
    %vm166 = vmor %vm158, %vm165
    %s167 = sld [smem:[#allocation2 + $0xc]]
    %s168 = sld [smem:[#allocation2 + $0x8c]]
    %v169 = vstv %s168
    %vm170 = vcmp.eq.s32.totalorder %v67, %v169
    %v171 = vstv %s167
    %vm172 = vcmp.eq.s32.totalorder %v69, %v171
    %vm173 = vmand %vm170, %vm172
    %vm174 = vmor %vm166, %vm173
    %s175 = sld [smem:[#allocation2 + $0xd]]
    %s176 = sld [smem:[#allocation2 + $0x8d]]
    %v177 = vstv %s176
    %vm178 = vcmp.eq.s32.totalorder %v67, %v177
    %v179 = vstv %s175
    %vm180 = vcmp.eq.s32.totalorder %v69, %v179
    %vm181 = vmand %vm178, %vm180
    %vm182 = vmor %vm174, %vm181
    %s183 = sld [smem:[#allocation2 + $0xe]]
    %s184 = sld [smem:[#allocation2 + $0x8e]]
    %v185 = vstv %s184
    %vm186 = vcmp.eq.s32.totalorder %v67, %v185
    %v187 = vstv %s183
    %vm188 = vcmp.eq.s32.totalorder %v69, %v187
    %vm189 = vmand %vm186, %vm188
    %vm190 = vmor %vm182, %vm189
    %s191 = sld [smem:[#allocation2 + $0xf]]
    %s192 = sld [smem:[#allocation2 + $0x8f]]
    %v193 = vstv %s192
    %vm194 = vcmp.eq.s32.totalorder %v67, %v193
    %v195 = vstv %s191
    %vm196 = vcmp.eq.s32.totalorder %v69, %v195
    %vm197 = vmand %vm194, %vm196
    %vm198 = vmor %vm190, %vm197
    %v199 = vsel %vm198, 0.0, -1e+30
    %v200 = vld [vmem:[%s1] sm:$0xff]
    %v201 = vld [vmem:[%s2] sm:$0xff]
    %v202 = vld [vmem:[%s2 + $0x8] sm:$0xff]
    %v203 = vld [vmem:[%s3] sm:$0xff]
    %v204 = vld [vmem:[%s3 + $0x8] sm:$0xff]
    %v205 = vld [vmem:[%s3 + $0x10] sm:$0xff]
    %v206 = vld [vmem:[%s3 + $0x18] sm:$0xff]
    %v207 = vld [vmem:[%s3 + $0x20] sm:$0xff]
    %v208 = vld [vmem:[%s3 + $0x28] sm:$0xff]
    %v209 = vld [vmem:[%s3 + $0x30] sm:$0xff]
    %v210 = vld [vmem:[%s3 + $0x38] sm:$0xff]
    %v211 = vld [vmem:[%s3 + $0x40] sm:$0xff]
    %v212 = vld [vmem:[%s3 + $0x48] sm:$0xff]
    %v213 = vld [vmem:[%s3 + $0x50] sm:$0xff]
    %v214 = vld [vmem:[%s3 + $0x58] sm:$0xff]
    %v215 = vld [vmem:[%s4] sm:$0xff]
    %v216 = vld [vmem:[%s4 + $0x8] sm:$0xff]
    %v217 = vld [vmem:[%s4 + $0x10] sm:$0xff]
    %v218 = vld [vmem:[%s4 + $0x18] sm:$0xff]
    %v219 = vld [vmem:[%s4 + $0x20] sm:$0xff]
    %v220 = vld [vmem:[%s4 + $0x28] sm:$0xff]
    %v221 = vld [vmem:[%s4 + $0x30] sm:$0xff]
    %v222 = vld [vmem:[%s4 + $0x38] sm:$0xff]
    %v223 = vld [vmem:[%s4 + $0x40] sm:$0xff]
    %v224 = vld [vmem:[%s4 + $0x48] sm:$0xff]
    %v225 = vld [vmem:[%s4 + $0x50] sm:$0xff]
    %v226 = vld [vmem:[%s4 + $0x58] sm:$0xff]
    %v227 = vld [vmem:[%s5] sm:$0x1]
    %vm228 = vcmask 130048
    %v230 = vsel %vm228, %v200, 0
    %232 = vmatprep.subr.mxu0 0.0
    %233 = vmatpush1.msra.mxu0 0.0
    %234 = vmatprep.subr.mxu0 0.0
    %235 = vmatpush1.msra.mxu0 0.0
    %236 = vmatprep.subr.mxu0 0.0
    %237 = vmatpush1.msra.mxu0 0.0
    %238 = vmatprep.subr.mxu0 0.0
    %239 = vmatpush1.msra.mxu0 0.0
    %240 = vmatprep.subr.mxu0 0.0
    %241 = vmatpush1.msra.mxu0 0.0
    %242 = vmatprep.subr.mxu0 0.0
    %243 = vmatpush1.msra.mxu0 0.0
    %244 = vmatprep.subr.mxu0 0.0
    %245 = vmatpush1.msra.mxu0 0.0
    %246 = vmatprep.subr.mxu0 0.0
    %247 = vmatpush1.msra.mxu0 0.0
    %248 = vmatprep.subr.mxu0 0.0
    %249 = vmatpush1.msra.mxu0 0.0
    %250 = vmatprep.subr.mxu0 0.0
    %251 = vmatpush1.msra.mxu0 0.0
    %252 = vmatprep.subr.mxu0 0.0
    %253 = vmatpush1.msra.mxu0 0.0
    %254 = vmatprep.subr.mxu0 0.0
    %255 = vmatpush1.msra.mxu0 0.0
    %256 = vmatprep.subr.mxu0 0.0
    %257 = vmatpush1.msra.mxu0 0.0
    %258 = vmatprep.subr.mxu0 0.0
    %259 = vmatpush1.msra.mxu0 0.0
    %260 = vmatprep.subr.mxu0 0.0
    %261 = vmatpush1.msra.mxu0 %v202
    %262 = vmatprep.subr.mxu0 0.0
    %263 = vmatpush1.msra.mxu0 %v201
    %264 = vmatprep.subr.mxu0 0.0
    %265 = vmatpush2.msra.mxu0 0.0
    %266 = vmatprep.subr.mxu0 0.0
    %267 = vmatpush2.msra.mxu0 0.0
    %268 = vmatprep.subr.mxu0 0.0
    %269 = vmatpush2.msra.mxu0 0.0
    %270 = vmatprep.subr.mxu0 0.0
    %271 = vmatpush2.msra.mxu0 0.0
    %272 = vmatprep.subr.mxu0 0.0
    %273 = vmatpush2.msra.mxu0 0.0
    %274 = vmatprep.subr.mxu0 0.0
    %275 = vmatpush2.msra.mxu0 0.0
    %276 = vmatprep.subr.mxu0 0.0
    %277 = vmatpush2.msra.mxu0 0.0
    %278 = vmatprep.subr.mxu0 0.0
    %279 = vmatpush2.msra.mxu0 0.0
    %280 = vmatprep.subr.mxu0 0.0
    %281 = vmatpush2.msra.mxu0 0.0
    %282 = vmatprep.subr.mxu0 0.0
    %283 = vmatpush2.msra.mxu0 0.0
    %284 = vmatprep.subr.mxu0 0.0
    %285 = vmatpush2.msra.mxu0 0.0
    %286 = vmatprep.subr.mxu0 0.0
    %287 = vmatpush2.msra.mxu0 0.0
    %288 = vmatprep.subr.mxu0 0.0
    %289 = vmatpush2.msra.mxu0 0.0
    %290 = vmatprep.subr.mxu0 0.0
    %291 = vmatpush2.msra.mxu0 0.0
    %292 = vmatprep.subr.mxu0 0.0
    %293 = vmatpush2.msra.mxu0 0.0
    %294 = vmatprep.subr.mxu0 0.0
    %295 = vmatpush2.msra.mxu0 0.0
    %296 = vmatprep.mubr.f32.mxu0 0.0
    %297 = vmatmul.mubr.f32.gmra.mxu0 %v230
    %v298 = vpop.f32.mrf.mxu0
    %v299 = vadd.f32 0.0, %v298
    %v300 = vpop.f32.mrf.mxu0
    %301 = vdwg.mxu0
    %vm302 = vcmask 785408
    %v304 = vsel %vm302, %v299, 0
    %306 = vmatprep.subr.mxu0 0.0
    %307 = vmatpush1.msra.mxu0 0.0
    %308 = vmatprep.subr.mxu0 0.0
    %309 = vmatpush1.msra.mxu0 0.0
    %310 = vmatprep.subr.mxu0 0.0
    %311 = vmatpush1.msra.mxu0 0.0
    %312 = vmatprep.subr.mxu0 0.0
    %313 = vmatpush1.msra.mxu0 0.0
    %314 = vmatprep.subr.mxu0 0.0
    %315 = vmatpush1.msra.mxu0 %v214
    %316 = vmatprep.subr.mxu0 0.0
    %317 = vmatpush1.msra.mxu0 %v213
    %318 = vmatprep.subr.mxu0 0.0
    %319 = vmatpush1.msra.mxu0 %v212
    %320 = vmatprep.subr.mxu0 0.0
    %321 = vmatpush1.msra.mxu0 %v211
    %322 = vmatprep.subr.mxu0 0.0
    %323 = vmatpush1.msra.mxu0 %v210
    %324 = vmatprep.subr.mxu0 0.0
    %325 = vmatpush1.msra.mxu0 %v209
    %326 = vmatprep.subr.mxu0 0.0
    %327 = vmatpush1.msra.mxu0 %v208
    %328 = vmatprep.subr.mxu0 0.0
    %329 = vmatpush1.msra.mxu0 %v207
    %330 = vmatprep.subr.mxu0 0.0
    %331 = vmatpush1.msra.mxu0 %v206
    %332 = vmatprep.subr.mxu0 0.0
    %333 = vmatpush1.msra.mxu0 %v205
    %334 = vmatprep.subr.mxu0 0.0
    %335 = vmatpush1.msra.mxu0 %v204
    %336 = vmatprep.subr.mxu0 0.0
    %337 = vmatpush1.msra.mxu0 %v203
    %338 = vmatprep.subr.mxu0 0.0
    %339 = vmatpush2.msra.mxu0 0.0
    %340 = vmatprep.subr.mxu0 0.0
    %341 = vmatpush2.msra.mxu0 0.0
    %342 = vmatprep.subr.mxu0 0.0
    %343 = vmatpush2.msra.mxu0 0.0
    %344 = vmatprep.subr.mxu0 0.0
    %345 = vmatpush2.msra.mxu0 0.0
    %346 = vmatprep.subr.mxu0 0.0
    %347 = vmatpush2.msra.mxu0 0.0
    %348 = vmatprep.subr.mxu0 0.0
    %349 = vmatpush2.msra.mxu0 0.0
    %350 = vmatprep.subr.mxu0 0.0
    %351 = vmatpush2.msra.mxu0 0.0
    %352 = vmatprep.subr.mxu0 0.0
    %353 = vmatpush2.msra.mxu0 0.0
    %354 = vmatprep.subr.mxu0 0.0
    %355 = vmatpush2.msra.mxu0 0.0
    %356 = vmatprep.subr.mxu0 0.0
    %357 = vmatpush2.msra.mxu0 0.0
    %358 = vmatprep.subr.mxu0 0.0
    %359 = vmatpush2.msra.mxu0 0.0
    %360 = vmatprep.subr.mxu0 0.0
    %361 = vmatpush2.msra.mxu0 0.0
    %362 = vmatprep.subr.mxu0 0.0
    %363 = vmatpush2.msra.mxu0 0.0
    %364 = vmatprep.subr.mxu0 0.0
    %365 = vmatpush2.msra.mxu0 0.0
    %366 = vmatprep.subr.mxu0 0.0
    %367 = vmatpush2.msra.mxu0 0.0
    %368 = vmatprep.subr.mxu0 0.0
    %369 = vmatpush2.msra.mxu0 0.0
    %370 = vmatprep.mubr.f32.mxu0 0.0
    %371 = vmatmul.mubr.f32.gmra.mxu0 %v304
    %v372 = vpop.f32.mrf.mxu0
    %v373 = vadd.f32 0.0, %v372
    %v374 = vpop.f32.mrf.mxu0
    %375 = vdwg.mxu0
    %376 = vxpose.xlu0.b32.start [1/16] %v215, 128
    %377 = vxpose.xlu0.b32.cont [2/16] %v216, 128
    %378 = vxpose.xlu0.b32.cont [3/16] %v217, 128
    %379 = vxpose.xlu0.b32.cont [4/16] %v218, 128
    %380 = vxpose.xlu0.b32.cont [5/16] %v219, 128
    %381 = vxpose.xlu0.b32.cont [6/16] %v220, 128
    %382 = vxpose.xlu0.b32.cont [7/16] %v221, 128
    %383 = vxpose.xlu0.b32.cont [8/16] %v222, 128
    %384 = vxpose.xlu0.b32.cont [9/16] %v223, 128
    %385 = vxpose.xlu0.b32.cont [10/16] %v224, 128
    %386 = vxpose.xlu0.b32.cont [11/16] %v225, 128
    %387 = vxpose.xlu0.b32.cont [12/16] %v226, 128
    %388 = vxpose.xlu0.b32.cont [13/16] 0.0, 128
    %389 = vxpose.xlu0.b32.cont [14/16] 0.0, 128
    %390 = vxpose.xlu0.b32.cont [15/16] 0.0, 128
    %391 = vxpose.xlu0.b32.end [16/16] 0.0, 128
    %v392 = vpop.trf.xlu0
    %v393 = vpop.trf.xlu0
    %v394 = vpop.trf.xlu0
    %v395 = vpop.trf.xlu0
    %v396 = vpop.trf.xlu0
    %v397 = vpop.trf.xlu0
    %v398 = vpop.trf.xlu0
    %v399 = vpop.trf.xlu0
    %v400 = vpop.trf.xlu0
    %v401 = vpop.trf.xlu0
    %v402 = vpop.trf.xlu0
    %v403 = vpop.trf.xlu0
    %v404 = vpop.trf.xlu0
    %v405 = vpop.trf.xlu0
    %v406 = vpop.trf.xlu0
    %v407 = vpop.trf.xlu0
    %v409 = vsel %vm302, %v392, 0
    %411 = vmatprep.subr.mxu0 0.0
    %412 = vmatpush1.xpose.msra.mxu0 0.0
    %413 = vmatprep.subr.mxu0 0.0
    %414 = vmatpush1.xpose.msra.mxu0 0.0
    %415 = vmatprep.subr.mxu0 0.0
    %416 = vmatpush1.xpose.msra.mxu0 0.0
    %417 = vmatprep.subr.mxu0 0.0
    %418 = vmatpush1.xpose.msra.mxu0 0.0
    %419 = vmatprep.subr.mxu0 0.0
    %420 = vmatpush1.xpose.msra.mxu0 0.0
    %421 = vmatprep.subr.mxu0 0.0
    %422 = vmatpush1.xpose.msra.mxu0 0.0
    %423 = vmatprep.subr.mxu0 0.0
    %424 = vmatpush1.xpose.msra.mxu0 0.0
    %425 = vmatprep.subr.mxu0 0.0
    %426 = vmatpush1.xpose.msra.mxu0 0.0
    %427 = vmatprep.subr.mxu0 0.0
    %428 = vmatpush1.xpose.msra.mxu0 0.0
    %429 = vmatprep.subr.mxu0 0.0
    %430 = vmatpush1.xpose.msra.mxu0 0.0
    %431 = vmatprep.subr.mxu0 0.0
    %432 = vmatpush1.xpose.msra.mxu0 0.0
    %433 = vmatprep.subr.mxu0 0.0
    %434 = vmatpush1.xpose.msra.mxu0 0.0
    %435 = vmatprep.subr.mxu0 0.0
    %436 = vmatpush1.xpose.msra.mxu0 0.0
    %437 = vmatprep.subr.mxu0 0.0
    %438 = vmatpush1.xpose.msra.mxu0 0.0
    %439 = vmatprep.subr.mxu0 0.0
    %440 = vmatpush1.xpose.msra.mxu0 0.0
    %441 = vmatprep.subr.mxu0 0.0
    %442 = vmatpush1.xpose.msra.mxu0 %v304
    %443 = vmatprep.subr.mxu0 0.0
    %444 = vmatpush2.xpose.msra.mxu0 0.0
    %445 = vmatprep.subr.mxu0 0.0
    %446 = vmatpush2.xpose.msra.mxu0 0.0
    %447 = vmatprep.subr.mxu0 0.0
    %448 = vmatpush2.xpose.msra.mxu0 0.0
    %449 = vmatprep.subr.mxu0 0.0
    %450 = vmatpush2.xpose.msra.mxu0 0.0
    %451 = vmatprep.subr.mxu0 0.0
    %452 = vmatpush2.xpose.msra.mxu0 0.0
    %453 = vmatprep.subr.mxu0 0.0
    %454 = vmatpush2.xpose.msra.mxu0 0.0
    %455 = vmatprep.subr.mxu0 0.0
    %456 = vmatpush2.xpose.msra.mxu0 0.0
    %457 = vmatprep.subr.mxu0 0.0
    %458 = vmatpush2.xpose.msra.mxu0 0.0
    %459 = vmatprep.subr.mxu0 0.0
    %460 = vmatpush2.xpose.msra.mxu0 0.0
    %461 = vmatprep.subr.mxu0 0.0
    %462 = vmatpush2.xpose.msra.mxu0 0.0
    %463 = vmatprep.subr.mxu0 0.0
    %464 = vmatpush2.xpose.msra.mxu0 0.0
    %465 = vmatprep.subr.mxu0 0.0
    %466 = vmatpush2.xpose.msra.mxu0 0.0
    %467 = vmatprep.subr.mxu0 0.0
    %468 = vmatpush2.xpose.msra.mxu0 0.0
    %469 = vmatprep.subr.mxu0 0.0
    %470 = vmatpush2.xpose.msra.mxu0 0.0
    %471 = vmatprep.subr.mxu0 0.0
    %472 = vmatpush2.xpose.msra.mxu0 0.0
    %473 = vmatprep.subr.mxu0 0.0
    %474 = vmatpush2.xpose.msra.mxu0 0.0
    %475 = vmatprep.mubr.f32.mxu0 0.0
    %476 = vmatmul.mubr.f32.gmra.mxu0 %v409
    %v477 = vpop.f32.mrf.mxu0
    %v478 = vadd.f32 0.0, %v477
    %v479 = vpop.f32.mrf.mxu0
    %480 = vdwg.mxu0
    %482 = vset.pattern.permute.xlu0 0
    %483 = vperm.xlu0 %482, %v373
    %v484 = vpop.permute.xlu0 %483
    %v486 = vlaneseq
    %v487 = vshrl.u32 %v486, 7
    %v488 = vsub.s32 0, %v487
    %v489 = vrot.slane %v478, %v488
    %v490 = vadd.f32 %v484, %v489
    %vm491 = vcmp.gt.f32.partialorder %v490, 0.0
    %v492 = vmul.f32 %v490, 0.2
    %v493 = vsel %vm491, %v490, %v492
    %v494 = vadd.f32 %v493, %v199
    %vm495 = vcmask 64512
    %v496 = vsel %vm495, %v494, -inf
    %497 = vmax.xlane.f32.xlu0 %v496
    %v498 = vpop.xlane.xlu0 %497
    %v499 = vsub.f32 %v494, %v498
    %v500 = vmul.f32 %v499, 1.442695
    %v501 = vpow.pop %v500
    %v502 = vsel %vm495, %v501, 0.0
    %503 = vadd.xlane.f32.xlu0 %v502
    %v504 = vpop.xlane.xlu0 %503
    %v505 = vrcp.pop %v504
    %v506 = vmul.f32 %v501, %v505
    %v508 = vsel %vm495, %v506, 0
    %510 = vmatprep.subr.mxu0 0.0
    %511 = vmatpush1.msra.mxu0 0.0
    %512 = vmatprep.subr.mxu0 0.0
    %513 = vmatpush1.msra.mxu0 0.0
    %514 = vmatprep.subr.mxu0 0.0
    %515 = vmatpush1.msra.mxu0 0.0
    %516 = vmatprep.subr.mxu0 0.0
    %517 = vmatpush1.msra.mxu0 0.0
    %518 = vmatprep.subr.mxu0 0.0
    %519 = vmatpush1.msra.mxu0 0.0
    %520 = vmatprep.subr.mxu0 0.0
    %521 = vmatpush1.msra.mxu0 0.0
    %522 = vmatprep.subr.mxu0 0.0
    %523 = vmatpush1.msra.mxu0 0.0
    %524 = vmatprep.subr.mxu0 0.0
    %525 = vmatpush1.msra.mxu0 0.0
    %526 = vmatprep.subr.mxu0 0.0
    %527 = vmatpush1.msra.mxu0 0.0
    %528 = vmatprep.subr.mxu0 0.0
    %529 = vmatpush1.msra.mxu0 0.0
    %530 = vmatprep.subr.mxu0 0.0
    %531 = vmatpush1.msra.mxu0 0.0
    %532 = vmatprep.subr.mxu0 0.0
    %533 = vmatpush1.msra.mxu0 0.0
    %534 = vmatprep.subr.mxu0 0.0
    %535 = vmatpush1.msra.mxu0 0.0
    %536 = vmatprep.subr.mxu0 0.0
    %537 = vmatpush1.msra.mxu0 0.0
    %538 = vmatprep.subr.mxu0 0.0
    %539 = vmatpush1.msra.mxu0 0.0
    %540 = vmatprep.subr.mxu0 0.0
    %541 = vmatpush1.msra.mxu0 %v299
    %542 = vmatprep.subr.mxu0 0.0
    %543 = vmatpush2.msra.mxu0 0.0
    %544 = vmatprep.subr.mxu0 0.0
    %545 = vmatpush2.msra.mxu0 0.0
    %546 = vmatprep.subr.mxu0 0.0
    %547 = vmatpush2.msra.mxu0 0.0
    %548 = vmatprep.subr.mxu0 0.0
    %549 = vmatpush2.msra.mxu0 0.0
    %550 = vmatprep.subr.mxu0 0.0
    %551 = vmatpush2.msra.mxu0 0.0
    %552 = vmatprep.subr.mxu0 0.0
    %553 = vmatpush2.msra.mxu0 0.0
    %554 = vmatprep.subr.mxu0 0.0
    %555 = vmatpush2.msra.mxu0 0.0
    %556 = vmatprep.subr.mxu0 0.0
    %557 = vmatpush2.msra.mxu0 0.0
    %558 = vmatprep.subr.mxu0 0.0
    %559 = vmatpush2.msra.mxu0 0.0
    %560 = vmatprep.subr.mxu0 0.0
    %561 = vmatpush2.msra.mxu0 0.0
    %562 = vmatprep.subr.mxu0 0.0
    %563 = vmatpush2.msra.mxu0 0.0
    %564 = vmatprep.subr.mxu0 0.0
    %565 = vmatpush2.msra.mxu0 0.0
    %566 = vmatprep.subr.mxu0 0.0
    %567 = vmatpush2.msra.mxu0 0.0
    %568 = vmatprep.subr.mxu0 0.0
    %569 = vmatpush2.msra.mxu0 0.0
    %570 = vmatprep.subr.mxu0 0.0
    %571 = vmatpush2.msra.mxu0 0.0
    %572 = vmatprep.subr.mxu0 0.0
    %573 = vmatpush2.msra.mxu0 0.0
    %574 = vmatprep.mubr.f32.mxu0 0.0
    %575 = vmatmul.mubr.f32.gmra.mxu0 %v508
    %v576 = vpop.f32.mrf.mxu0
    %v577 = vadd.f32 0.0, %v576
    %v578 = vpop.f32.mrf.mxu0
    %579 = vdwg.mxu0
    %580 = vset.pattern.permute.xlu0 1
    %581 = vperm.xlu0 %580, %v373
    %v582 = vpop.permute.xlu0 %581
    %v584 = vlaneseq
    %v585 = vshrl.u32 %v584, 7
    %v586 = vsub.s32 1, %v585
    %v587 = vrot.slane %v478, %v586
    %v588 = vadd.f32 %v582, %v587
    %vm589 = vcmp.gt.f32.partialorder %v588, 0.0
    %v590 = vmul.f32 %v588, 0.2
    %v591 = vsel %vm589, %v588, %v590
    %v592 = vadd.f32 %v591, %v199
    %v593 = vsel %vm495, %v592, -inf
    %594 = vmax.xlane.f32.xlu0 %v593
    %v595 = vpop.xlane.xlu0 %594
    %v596 = vsub.f32 %v592, %v595
    %v597 = vmul.f32 %v596, 1.442695
    %v598 = vpow.pop %v597
    %v599 = vsel %vm495, %v598, 0.0
    %600 = vadd.xlane.f32.xlu0 %v599
    %v601 = vpop.xlane.xlu0 %600
    %v602 = vrcp.pop %v601
    %v603 = vmul.f32 %v598, %v602
    %604 = vrot.lane.b32.xlu0 %v299, 96
    %v605 = vpop.permute.xlu0 %604
    %v608 = vsel %vm495, %v603, 0
    %610 = vmatprep.subr.mxu0 0.0
    %611 = vmatpush1.msra.mxu0 0.0
    %612 = vmatprep.subr.mxu0 0.0
    %613 = vmatpush1.msra.mxu0 0.0
    %614 = vmatprep.subr.mxu0 0.0
    %615 = vmatpush1.msra.mxu0 0.0
    %616 = vmatprep.subr.mxu0 0.0
    %617 = vmatpush1.msra.mxu0 0.0
    %618 = vmatprep.subr.mxu0 0.0
    %619 = vmatpush1.msra.mxu0 0.0
    %620 = vmatprep.subr.mxu0 0.0
    %621 = vmatpush1.msra.mxu0 0.0
    %622 = vmatprep.subr.mxu0 0.0
    %623 = vmatpush1.msra.mxu0 0.0
    %624 = vmatprep.subr.mxu0 0.0
    %625 = vmatpush1.msra.mxu0 0.0
    %626 = vmatprep.subr.mxu0 0.0
    %627 = vmatpush1.msra.mxu0 0.0
    %628 = vmatprep.subr.mxu0 0.0
    %629 = vmatpush1.msra.mxu0 0.0
    %630 = vmatprep.subr.mxu0 0.0
    %631 = vmatpush1.msra.mxu0 0.0
    %632 = vmatprep.subr.mxu0 0.0
    %633 = vmatpush1.msra.mxu0 0.0
    %634 = vmatprep.subr.mxu0 0.0
    %635 = vmatpush1.msra.mxu0 0.0
    %636 = vmatprep.subr.mxu0 0.0
    %637 = vmatpush1.msra.mxu0 0.0
    %638 = vmatprep.subr.mxu0 0.0
    %639 = vmatpush1.msra.mxu0 0.0
    %640 = vmatprep.subr.mxu0 0.0
    %641 = vmatpush1.msra.mxu0 %v605
    %642 = vmatprep.subr.mxu0 0.0
    %643 = vmatpush2.msra.mxu0 0.0
    %644 = vmatprep.subr.mxu0 0.0
    %645 = vmatpush2.msra.mxu0 0.0
    %646 = vmatprep.subr.mxu0 0.0
    %647 = vmatpush2.msra.mxu0 0.0
    %648 = vmatprep.subr.mxu0 0.0
    %649 = vmatpush2.msra.mxu0 0.0
    %650 = vmatprep.subr.mxu0 0.0
    %651 = vmatpush2.msra.mxu0 0.0
    %652 = vmatprep.subr.mxu0 0.0
    %653 = vmatpush2.msra.mxu0 0.0
    %654 = vmatprep.subr.mxu0 0.0
    %655 = vmatpush2.msra.mxu0 0.0
    %656 = vmatprep.subr.mxu0 0.0
    %657 = vmatpush2.msra.mxu0 0.0
    %658 = vmatprep.subr.mxu0 0.0
    %659 = vmatpush2.msra.mxu0 0.0
    %660 = vmatprep.subr.mxu0 0.0
    %661 = vmatpush2.msra.mxu0 0.0
    %662 = vmatprep.subr.mxu0 0.0
    %663 = vmatpush2.msra.mxu0 0.0
    %664 = vmatprep.subr.mxu0 0.0
    %665 = vmatpush2.msra.mxu0 0.0
    %666 = vmatprep.subr.mxu0 0.0
    %667 = vmatpush2.msra.mxu0 0.0
    %668 = vmatprep.subr.mxu0 0.0
    %669 = vmatpush2.msra.mxu0 0.0
    %670 = vmatprep.subr.mxu0 0.0
    %671 = vmatpush2.msra.mxu0 0.0
    %672 = vmatprep.subr.mxu0 0.0
    %673 = vmatpush2.msra.mxu0 0.0
    %674 = vmatprep.mubr.f32.mxu0 0.0
    %675 = vmatmul.mubr.f32.gmra.mxu0 %v608
    %v676 = vpop.f32.mrf.mxu0
    %v677 = vadd.f32 0.0, %v676
    %v678 = vpop.f32.mrf.mxu0
    %679 = vdwg.mxu0
    %680 = vset.pattern.permute.xlu0 2
    %681 = vperm.xlu0 %680, %v373
    %v682 = vpop.permute.xlu0 %681
    %v684 = vlaneseq
    %v685 = vshrl.u32 %v684, 7
    %v686 = vsub.s32 2, %v685
    %v687 = vrot.slane %v478, %v686
    %v688 = vadd.f32 %v682, %v687
    %vm689 = vcmp.gt.f32.partialorder %v688, 0.0
    %v690 = vmul.f32 %v688, 0.2
    %v691 = vsel %vm689, %v688, %v690
    %v692 = vadd.f32 %v691, %v199
    %v693 = vsel %vm495, %v692, -inf
    %694 = vmax.xlane.f32.xlu0 %v693
    %v695 = vpop.xlane.xlu0 %694
    %v696 = vsub.f32 %v692, %v695
    %v697 = vmul.f32 %v696, 1.442695
    %v698 = vpow.pop %v697
    %v699 = vsel %vm495, %v698, 0.0
    %700 = vadd.xlane.f32.xlu0 %v699
    %v701 = vpop.xlane.xlu0 %700
    %v702 = vrcp.pop %v701
    %v703 = vmul.f32 %v698, %v702
    %704 = vrot.lane.b32.xlu0 %v299, 64
    %v705 = vpop.permute.xlu0 %704
    %v708 = vsel %vm495, %v703, 0
    %710 = vmatprep.subr.mxu0 0.0
    %711 = vmatpush1.msra.mxu0 0.0
    %712 = vmatprep.subr.mxu0 0.0
    %713 = vmatpush1.msra.mxu0 0.0
    %714 = vmatprep.subr.mxu0 0.0
    %715 = vmatpush1.msra.mxu0 0.0
    %716 = vmatprep.subr.mxu0 0.0
    %717 = vmatpush1.msra.mxu0 0.0
    %718 = vmatprep.subr.mxu0 0.0
    %719 = vmatpush1.msra.mxu0 0.0
    %720 = vmatprep.subr.mxu0 0.0
    %721 = vmatpush1.msra.mxu0 0.0
    %722 = vmatprep.subr.mxu0 0.0
    %723 = vmatpush1.msra.mxu0 0.0
    %724 = vmatprep.subr.mxu0 0.0
    %725 = vmatpush1.msra.mxu0 0.0
    %726 = vmatprep.subr.mxu0 0.0
    %727 = vmatpush1.msra.mxu0 0.0
    %728 = vmatprep.subr.mxu0 0.0
    %729 = vmatpush1.msra.mxu0 0.0
    %730 = vmatprep.subr.mxu0 0.0
    %731 = vmatpush1.msra.mxu0 0.0
    %732 = vmatprep.subr.mxu0 0.0
    %733 = vmatpush1.msra.mxu0 0.0
    %734 = vmatprep.subr.mxu0 0.0
    %735 = vmatpush1.msra.mxu0 0.0
    %736 = vmatprep.subr.mxu0 0.0
    %737 = vmatpush1.msra.mxu0 0.0
    %738 = vmatprep.subr.mxu0 0.0
    %739 = vmatpush1.msra.mxu0 0.0
    %740 = vmatprep.subr.mxu0 0.0
    %741 = vmatpush1.msra.mxu0 %v705
    %742 = vmatprep.subr.mxu0 0.0
    %743 = vmatpush2.msra.mxu0 0.0
    %744 = vmatprep.subr.mxu0 0.0
    %745 = vmatpush2.msra.mxu0 0.0
    %746 = vmatprep.subr.mxu0 0.0
    %747 = vmatpush2.msra.mxu0 0.0
    %748 = vmatprep.subr.mxu0 0.0
    %749 = vmatpush2.msra.mxu0 0.0
    %750 = vmatprep.subr.mxu0 0.0
    %751 = vmatpush2.msra.mxu0 0.0
    %752 = vmatprep.subr.mxu0 0.0
    %753 = vmatpush2.msra.mxu0 0.0
    %754 = vmatprep.subr.mxu0 0.0
    %755 = vmatpush2.msra.mxu0 0.0
    %756 = vmatprep.subr.mxu0 0.0
    %757 = vmatpush2.msra.mxu0 0.0
    %758 = vmatprep.subr.mxu0 0.0
    %759 = vmatpush2.msra.mxu0 0.0
    %760 = vmatprep.subr.mxu0 0.0
    %761 = vmatpush2.msra.mxu0 0.0
    %762 = vmatprep.subr.mxu0 0.0
    %763 = vmatpush2.msra.mxu0 0.0
    %764 = vmatprep.subr.mxu0 0.0
    %765 = vmatpush2.msra.mxu0 0.0
    %766 = vmatprep.subr.mxu0 0.0
    %767 = vmatpush2.msra.mxu0 0.0
    %768 = vmatprep.subr.mxu0 0.0
    %769 = vmatpush2.msra.mxu0 0.0
    %770 = vmatprep.subr.mxu0 0.0
    %771 = vmatpush2.msra.mxu0 0.0
    %772 = vmatprep.subr.mxu0 0.0
    %773 = vmatpush2.msra.mxu0 0.0
    %774 = vmatprep.mubr.f32.mxu0 0.0
    %775 = vmatmul.mubr.f32.gmra.mxu0 %v708
    %v776 = vpop.f32.mrf.mxu0
    %v777 = vadd.f32 0.0, %v776
    %v778 = vpop.f32.mrf.mxu0
    %779 = vdwg.mxu0
    %781 = vrot.lane.b32.xlu0 %v677, 32
    %v782 = vpop.permute.xlu0 %781
    %785 = vrot.lane.b32.xlu0 %v777, 64
    %v786 = vpop.permute.xlu0 %785
    %vm788 = vcmask 261120
    %v789 = vsel %vm788, %v577, %v782
    %vm790 = vcmask 523264
    %v791 = vsel %vm790, %v789, %v786
    %v793 = vlaneseq
    %v794 = vshrl.u32 %v793, 7
    %v795 = vsub.s32 0, %v794
    %v796 = vrot.slane %v227, %v795
    %v798 = vadd.f32 %v791, %v796
    %v799 = vmax.f32 %v798, 0.0
    %v800 = vld [vmem:[%s6] sm:$0xff]
    %v801 = vld [vmem:[%s6 + $0x8] sm:$0xff]
    %v802 = vld [vmem:[%s6 + $0x10] sm:$0xff]
    %v803 = vld [vmem:[%s6 + $0x18] sm:$0xff]
    %v804 = vld [vmem:[%s6 + $0x20] sm:$0xff]
    %v805 = vld [vmem:[%s6 + $0x28] sm:$0xff]
    %v806 = vld [vmem:[%s6 + $0x30] sm:$0xff]
    %v807 = vld [vmem:[%s6 + $0x38] sm:$0xff]
    %v808 = vld [vmem:[%s6 + $0x40] sm:$0xff]
    %v809 = vld [vmem:[%s6 + $0x48] sm:$0xff]
    %v810 = vld [vmem:[%s6 + $0x50] sm:$0xff]
    %v811 = vld [vmem:[%s6 + $0x58] sm:$0xff]
    %v812 = vld [vmem:[%s7] sm:$0xff]
    %v813 = vld [vmem:[%s7 + $0x8] sm:$0xff]
    %v814 = vld [vmem:[%s7 + $0x10] sm:$0xff]
    %v815 = vld [vmem:[%s7 + $0x18] sm:$0xff]
    %v816 = vld [vmem:[%s7 + $0x20] sm:$0xff]
    %v817 = vld [vmem:[%s7 + $0x28] sm:$0xff]
    %v818 = vld [vmem:[%s7 + $0x30] sm:$0xff]
    %v819 = vld [vmem:[%s7 + $0x38] sm:$0xff]
    %v820 = vld [vmem:[%s7 + $0x40] sm:$0xff]
    %v821 = vld [vmem:[%s7 + $0x48] sm:$0xff]
    %v822 = vld [vmem:[%s7 + $0x50] sm:$0xff]
    %v823 = vld [vmem:[%s7 + $0x58] sm:$0xff]
    %v824 = vld [vmem:[%s8] sm:$0xff]
    %v825 = vld [vmem:[%s8 + $0x8] sm:$0xff]
    %v826 = vld [vmem:[%s8 + $0x10] sm:$0xff]
    %v827 = vld [vmem:[%s8 + $0x18] sm:$0xff]
    %v828 = vld [vmem:[%s8 + $0x20] sm:$0xff]
    %v829 = vld [vmem:[%s8 + $0x28] sm:$0xff]
    %v830 = vld [vmem:[%s8 + $0x30] sm:$0xff]
    %v831 = vld [vmem:[%s8 + $0x38] sm:$0xff]
    %v832 = vld [vmem:[%s8 + $0x40] sm:$0xff]
    %v833 = vld [vmem:[%s8 + $0x48] sm:$0xff]
    %v834 = vld [vmem:[%s8 + $0x50] sm:$0xff]
    %v835 = vld [vmem:[%s8 + $0x58] sm:$0xff]
    %v836 = vld [vmem:[%s9] sm:$0x1]
    %v838 = vsel %vm302, %v799, 0
    %840 = vmatprep.subr.mxu0 0.0
    %841 = vmatpush1.msra.mxu0 0.0
    %842 = vmatprep.subr.mxu0 0.0
    %843 = vmatpush1.msra.mxu0 0.0
    %844 = vmatprep.subr.mxu0 0.0
    %845 = vmatpush1.msra.mxu0 0.0
    %846 = vmatprep.subr.mxu0 0.0
    %847 = vmatpush1.msra.mxu0 0.0
    %848 = vmatprep.subr.mxu0 0.0
    %849 = vmatpush1.msra.mxu0 %v811
    %850 = vmatprep.subr.mxu0 0.0
    %851 = vmatpush1.msra.mxu0 %v810
    %852 = vmatprep.subr.mxu0 0.0
    %853 = vmatpush1.msra.mxu0 %v809
    %854 = vmatprep.subr.mxu0 0.0
    %855 = vmatpush1.msra.mxu0 %v808
    %856 = vmatprep.subr.mxu0 0.0
    %857 = vmatpush1.msra.mxu0 %v807
    %858 = vmatprep.subr.mxu0 0.0
    %859 = vmatpush1.msra.mxu0 %v806
    %860 = vmatprep.subr.mxu0 0.0
    %861 = vmatpush1.msra.mxu0 %v805
    %862 = vmatprep.subr.mxu0 0.0
    %863 = vmatpush1.msra.mxu0 %v804
    %864 = vmatprep.subr.mxu0 0.0
    %865 = vmatpush1.msra.mxu0 %v803
    %866 = vmatprep.subr.mxu0 0.0
    %867 = vmatpush1.msra.mxu0 %v802
    %868 = vmatprep.subr.mxu0 0.0
    %869 = vmatpush1.msra.mxu0 %v801
    %870 = vmatprep.subr.mxu0 0.0
    %871 = vmatpush1.msra.mxu0 %v800
    %872 = vmatprep.subr.mxu0 0.0
    %873 = vmatpush2.msra.mxu0 0.0
    %874 = vmatprep.subr.mxu0 0.0
    %875 = vmatpush2.msra.mxu0 0.0
    %876 = vmatprep.subr.mxu0 0.0
    %877 = vmatpush2.msra.mxu0 0.0
    %878 = vmatprep.subr.mxu0 0.0
    %879 = vmatpush2.msra.mxu0 0.0
    %880 = vmatprep.subr.mxu0 0.0
    %881 = vmatpush2.msra.mxu0 0.0
    %882 = vmatprep.subr.mxu0 0.0
    %883 = vmatpush2.msra.mxu0 0.0
    %884 = vmatprep.subr.mxu0 0.0
    %885 = vmatpush2.msra.mxu0 0.0
    %886 = vmatprep.subr.mxu0 0.0
    %887 = vmatpush2.msra.mxu0 0.0
    %888 = vmatprep.subr.mxu0 0.0
    %889 = vmatpush2.msra.mxu0 0.0
    %890 = vmatprep.subr.mxu0 0.0
    %891 = vmatpush2.msra.mxu0 0.0
    %892 = vmatprep.subr.mxu0 0.0
    %893 = vmatpush2.msra.mxu0 0.0
    %894 = vmatprep.subr.mxu0 0.0
    %895 = vmatpush2.msra.mxu0 0.0
    %896 = vmatprep.subr.mxu0 0.0
    %897 = vmatpush2.msra.mxu0 0.0
    %898 = vmatprep.subr.mxu0 0.0
    %899 = vmatpush2.msra.mxu0 0.0
    %900 = vmatprep.subr.mxu0 0.0
    %901 = vmatpush2.msra.mxu0 0.0
    %902 = vmatprep.subr.mxu0 0.0
    %903 = vmatpush2.msra.mxu0 0.0
    %904 = vmatprep.mubr.f32.mxu0 0.0
    %905 = vmatmul.mubr.f32.gmra.mxu0 %v838
    %v906 = vpop.f32.mrf.mxu0
    %v907 = vadd.f32 0.0, %v906
    %v908 = vpop.f32.mrf.mxu0
    %909 = vdwg.mxu0
    %v911 = vsel %vm302, %v907, 0
    %913 = vmatprep.subr.mxu0 0.0
    %914 = vmatpush1.msra.mxu0 0.0
    %915 = vmatprep.subr.mxu0 0.0
    %916 = vmatpush1.msra.mxu0 0.0
    %917 = vmatprep.subr.mxu0 0.0
    %918 = vmatpush1.msra.mxu0 0.0
    %919 = vmatprep.subr.mxu0 0.0
    %920 = vmatpush1.msra.mxu0 0.0
    %921 = vmatprep.subr.mxu0 0.0
    %922 = vmatpush1.msra.mxu0 %v823
    %923 = vmatprep.subr.mxu0 0.0
    %924 = vmatpush1.msra.mxu0 %v822
    %925 = vmatprep.subr.mxu0 0.0
    %926 = vmatpush1.msra.mxu0 %v821
    %927 = vmatprep.subr.mxu0 0.0
    %928 = vmatpush1.msra.mxu0 %v820
    %929 = vmatprep.subr.mxu0 0.0
    %930 = vmatpush1.msra.mxu0 %v819
    %931 = vmatprep.subr.mxu0 0.0
    %932 = vmatpush1.msra.mxu0 %v818
    %933 = vmatprep.subr.mxu0 0.0
    %934 = vmatpush1.msra.mxu0 %v817
    %935 = vmatprep.subr.mxu0 0.0
    %936 = vmatpush1.msra.mxu0 %v816
    %937 = vmatprep.subr.mxu0 0.0
    %938 = vmatpush1.msra.mxu0 %v815
    %939 = vmatprep.subr.mxu0 0.0
    %940 = vmatpush1.msra.mxu0 %v814
    %941 = vmatprep.subr.mxu0 0.0
    %942 = vmatpush1.msra.mxu0 %v813
    %943 = vmatprep.subr.mxu0 0.0
    %944 = vmatpush1.msra.mxu0 %v812
    %945 = vmatprep.subr.mxu0 0.0
    %946 = vmatpush2.msra.mxu0 0.0
    %947 = vmatprep.subr.mxu0 0.0
    %948 = vmatpush2.msra.mxu0 0.0
    %949 = vmatprep.subr.mxu0 0.0
    %950 = vmatpush2.msra.mxu0 0.0
    %951 = vmatprep.subr.mxu0 0.0
    %952 = vmatpush2.msra.mxu0 0.0
    %953 = vmatprep.subr.mxu0 0.0
    %954 = vmatpush2.msra.mxu0 0.0
    %955 = vmatprep.subr.mxu0 0.0
    %956 = vmatpush2.msra.mxu0 0.0
    %957 = vmatprep.subr.mxu0 0.0
    %958 = vmatpush2.msra.mxu0 0.0
    %959 = vmatprep.subr.mxu0 0.0
    %960 = vmatpush2.msra.mxu0 0.0
    %961 = vmatprep.subr.mxu0 0.0
    %962 = vmatpush2.msra.mxu0 0.0
    %963 = vmatprep.subr.mxu0 0.0
    %964 = vmatpush2.msra.mxu0 0.0
    %965 = vmatprep.subr.mxu0 0.0
    %966 = vmatpush2.msra.mxu0 0.0
    %967 = vmatprep.subr.mxu0 0.0
    %968 = vmatpush2.msra.mxu0 0.0
    %969 = vmatprep.subr.mxu0 0.0
    %970 = vmatpush2.msra.mxu0 0.0
    %971 = vmatprep.subr.mxu0 0.0
    %972 = vmatpush2.msra.mxu0 0.0
    %973 = vmatprep.subr.mxu0 0.0
    %974 = vmatpush2.msra.mxu0 0.0
    %975 = vmatprep.subr.mxu0 0.0
    %976 = vmatpush2.msra.mxu0 0.0
    %977 = vmatprep.mubr.f32.mxu0 0.0
    %978 = vmatmul.mubr.f32.gmra.mxu0 %v911
    %v979 = vpop.f32.mrf.mxu0
    %v980 = vadd.f32 0.0, %v979
    %v981 = vpop.f32.mrf.mxu0
    %982 = vdwg.mxu0
    %983 = vxpose.xlu0.b32.start [1/16] %v824, 128
    %984 = vxpose.xlu0.b32.cont [2/16] %v825, 128
    %985 = vxpose.xlu0.b32.cont [3/16] %v826, 128
    %986 = vxpose.xlu0.b32.cont [4/16] %v827, 128
    %987 = vxpose.xlu0.b32.cont [5/16] %v828, 128
    %988 = vxpose.xlu0.b32.cont [6/16] %v829, 128
    %989 = vxpose.xlu0.b32.cont [7/16] %v830, 128
    %990 = vxpose.xlu0.b32.cont [8/16] %v831, 128
    %991 = vxpose.xlu0.b32.cont [9/16] %v832, 128
    %992 = vxpose.xlu0.b32.cont [10/16] %v833, 128
    %993 = vxpose.xlu0.b32.cont [11/16] %v834, 128
    %994 = vxpose.xlu0.b32.cont [12/16] %v835, 128
    %995 = vxpose.xlu0.b32.cont [13/16] 0.0, 128
    %996 = vxpose.xlu0.b32.cont [14/16] 0.0, 128
    %997 = vxpose.xlu0.b32.cont [15/16] 0.0, 128
    %998 = vxpose.xlu0.b32.end [16/16] 0.0, 128
    %v999 = vpop.trf.xlu0
    %v1000 = vpop.trf.xlu0
    %v1001 = vpop.trf.xlu0
    %v1002 = vpop.trf.xlu0
    %v1003 = vpop.trf.xlu0
    %v1004 = vpop.trf.xlu0
    %v1005 = vpop.trf.xlu0
    %v1006 = vpop.trf.xlu0
    %v1007 = vpop.trf.xlu0
    %v1008 = vpop.trf.xlu0
    %v1009 = vpop.trf.xlu0
    %v1010 = vpop.trf.xlu0
    %v1011 = vpop.trf.xlu0
    %v1012 = vpop.trf.xlu0
    %v1013 = vpop.trf.xlu0
    %v1014 = vpop.trf.xlu0
    %v1016 = vsel %vm302, %v999, 0
    %1018 = vmatprep.subr.mxu0 0.0
    %1019 = vmatpush1.xpose.msra.mxu0 0.0
    %1020 = vmatprep.subr.mxu0 0.0
    %1021 = vmatpush1.xpose.msra.mxu0 0.0
    %1022 = vmatprep.subr.mxu0 0.0
    %1023 = vmatpush1.xpose.msra.mxu0 0.0
    %1024 = vmatprep.subr.mxu0 0.0
    %1025 = vmatpush1.xpose.msra.mxu0 0.0
    %1026 = vmatprep.subr.mxu0 0.0
    %1027 = vmatpush1.xpose.msra.mxu0 0.0
    %1028 = vmatprep.subr.mxu0 0.0
    %1029 = vmatpush1.xpose.msra.mxu0 0.0
    %1030 = vmatprep.subr.mxu0 0.0
    %1031 = vmatpush1.xpose.msra.mxu0 0.0
    %1032 = vmatprep.subr.mxu0 0.0
    %1033 = vmatpush1.xpose.msra.mxu0 0.0
    %1034 = vmatprep.subr.mxu0 0.0
    %1035 = vmatpush1.xpose.msra.mxu0 0.0
    %1036 = vmatprep.subr.mxu0 0.0
    %1037 = vmatpush1.xpose.msra.mxu0 0.0
    %1038 = vmatprep.subr.mxu0 0.0
    %1039 = vmatpush1.xpose.msra.mxu0 0.0
    %1040 = vmatprep.subr.mxu0 0.0
    %1041 = vmatpush1.xpose.msra.mxu0 0.0
    %1042 = vmatprep.subr.mxu0 0.0
    %1043 = vmatpush1.xpose.msra.mxu0 0.0
    %1044 = vmatprep.subr.mxu0 0.0
    %1045 = vmatpush1.xpose.msra.mxu0 0.0
    %1046 = vmatprep.subr.mxu0 0.0
    %1047 = vmatpush1.xpose.msra.mxu0 0.0
    %1048 = vmatprep.subr.mxu0 0.0
    %1049 = vmatpush1.xpose.msra.mxu0 %v911
    %1050 = vmatprep.subr.mxu0 0.0
    %1051 = vmatpush2.xpose.msra.mxu0 0.0
    %1052 = vmatprep.subr.mxu0 0.0
    %1053 = vmatpush2.xpose.msra.mxu0 0.0
    %1054 = vmatprep.subr.mxu0 0.0
    %1055 = vmatpush2.xpose.msra.mxu0 0.0
    %1056 = vmatprep.subr.mxu0 0.0
    %1057 = vmatpush2.xpose.msra.mxu0 0.0
    %1058 = vmatprep.subr.mxu0 0.0
    %1059 = vmatpush2.xpose.msra.mxu0 0.0
    %1060 = vmatprep.subr.mxu0 0.0
    %1061 = vmatpush2.xpose.msra.mxu0 0.0
    %1062 = vmatprep.subr.mxu0 0.0
    %1063 = vmatpush2.xpose.msra.mxu0 0.0
    %1064 = vmatprep.subr.mxu0 0.0
    %1065 = vmatpush2.xpose.msra.mxu0 0.0
    %1066 = vmatprep.subr.mxu0 0.0
    %1067 = vmatpush2.xpose.msra.mxu0 0.0
    %1068 = vmatprep.subr.mxu0 0.0
    %1069 = vmatpush2.xpose.msra.mxu0 0.0
    %1070 = vmatprep.subr.mxu0 0.0
    %1071 = vmatpush2.xpose.msra.mxu0 0.0
    %1072 = vmatprep.subr.mxu0 0.0
    %1073 = vmatpush2.xpose.msra.mxu0 0.0
    %1074 = vmatprep.subr.mxu0 0.0
    %1075 = vmatpush2.xpose.msra.mxu0 0.0
    %1076 = vmatprep.subr.mxu0 0.0
    %1077 = vmatpush2.xpose.msra.mxu0 0.0
    %1078 = vmatprep.subr.mxu0 0.0
    %1079 = vmatpush2.xpose.msra.mxu0 0.0
    %1080 = vmatprep.subr.mxu0 0.0
    %1081 = vmatpush2.xpose.msra.mxu0 0.0
    %1082 = vmatprep.mubr.f32.mxu0 0.0
    %1083 = vmatmul.mubr.f32.gmra.mxu0 %v1016
    %v1084 = vpop.f32.mrf.mxu0
    %v1085 = vadd.f32 0.0, %v1084
    %v1086 = vpop.f32.mrf.mxu0
    %1087 = vdwg.mxu0
    %1089 = vset.pattern.permute.xlu0 0
    %1090 = vperm.xlu0 %1089, %v980
    %v1091 = vpop.permute.xlu0 %1090
    %v1093 = vlaneseq
    %v1094 = vshrl.u32 %v1093, 7
    %v1095 = vsub.s32 0, %v1094
    %v1096 = vrot.slane %v1085, %v1095
    %v1097 = vadd.f32 %v1091, %v1096
    %vm1098 = vcmp.gt.f32.partialorder %v1097, 0.0
    %v1099 = vmul.f32 %v1097, 0.2
    %v1100 = vsel %vm1098, %v1097, %v1099
    %v1101 = vadd.f32 %v1100, %v199
    %v1102 = vsel %vm495, %v1101, -inf
    %1103 = vmax.xlane.f32.xlu0 %v1102
    %v1104 = vpop.xlane.xlu0 %1103
    %v1105 = vsub.f32 %v1101, %v1104
    %v1106 = vmul.f32 %v1105, 1.442695
    %v1107 = vpow.pop %v1106
    %v1108 = vsel %vm495, %v1107, 0.0
    %1109 = vadd.xlane.f32.xlu0 %v1108
    %v1110 = vpop.xlane.xlu0 %1109
    %v1111 = vrcp.pop %v1110
    %v1112 = vmul.f32 %v1107, %v1111
    %v1114 = vsel %vm495, %v1112, 0
    %1116 = vmatprep.subr.mxu0 0.0
    %1117 = vmatpush1.msra.mxu0 0.0
    %1118 = vmatprep.subr.mxu0 0.0
    %1119 = vmatpush1.msra.mxu0 0.0
    %1120 = vmatprep.subr.mxu0 0.0
    %1121 = vmatpush1.msra.mxu0 0.0
    %1122 = vmatprep.subr.mxu0 0.0
    %1123 = vmatpush1.msra.mxu0 0.0
    %1124 = vmatprep.subr.mxu0 0.0
    %1125 = vmatpush1.msra.mxu0 0.0
    %1126 = vmatprep.subr.mxu0 0.0
    %1127 = vmatpush1.msra.mxu0 0.0
    %1128 = vmatprep.subr.mxu0 0.0
    %1129 = vmatpush1.msra.mxu0 0.0
    %1130 = vmatprep.subr.mxu0 0.0
    %1131 = vmatpush1.msra.mxu0 0.0
    %1132 = vmatprep.subr.mxu0 0.0
    %1133 = vmatpush1.msra.mxu0 0.0
    %1134 = vmatprep.subr.mxu0 0.0
    %1135 = vmatpush1.msra.mxu0 0.0
    %1136 = vmatprep.subr.mxu0 0.0
    %1137 = vmatpush1.msra.mxu0 0.0
    %1138 = vmatprep.subr.mxu0 0.0
    %1139 = vmatpush1.msra.mxu0 0.0
    %1140 = vmatprep.subr.mxu0 0.0
    %1141 = vmatpush1.msra.mxu0 0.0
    %1142 = vmatprep.subr.mxu0 0.0
    %1143 = vmatpush1.msra.mxu0 0.0
    %1144 = vmatprep.subr.mxu0 0.0
    %1145 = vmatpush1.msra.mxu0 0.0
    %1146 = vmatprep.subr.mxu0 0.0
    %1147 = vmatpush1.msra.mxu0 %v907
    %1148 = vmatprep.subr.mxu0 0.0
    %1149 = vmatpush2.msra.mxu0 0.0
    %1150 = vmatprep.subr.mxu0 0.0
    %1151 = vmatpush2.msra.mxu0 0.0
    %1152 = vmatprep.subr.mxu0 0.0
    %1153 = vmatpush2.msra.mxu0 0.0
    %1154 = vmatprep.subr.mxu0 0.0
    %1155 = vmatpush2.msra.mxu0 0.0
    %1156 = vmatprep.subr.mxu0 0.0
    %1157 = vmatpush2.msra.mxu0 0.0
    %1158 = vmatprep.subr.mxu0 0.0
    %1159 = vmatpush2.msra.mxu0 0.0
    %1160 = vmatprep.subr.mxu0 0.0
    %1161 = vmatpush2.msra.mxu0 0.0
    %1162 = vmatprep.subr.mxu0 0.0
    %1163 = vmatpush2.msra.mxu0 0.0
    %1164 = vmatprep.subr.mxu0 0.0
    %1165 = vmatpush2.msra.mxu0 0.0
    %1166 = vmatprep.subr.mxu0 0.0
    %1167 = vmatpush2.msra.mxu0 0.0
    %1168 = vmatprep.subr.mxu0 0.0
    %1169 = vmatpush2.msra.mxu0 0.0
    %1170 = vmatprep.subr.mxu0 0.0
    %1171 = vmatpush2.msra.mxu0 0.0
    %1172 = vmatprep.subr.mxu0 0.0
    %1173 = vmatpush2.msra.mxu0 0.0
    %1174 = vmatprep.subr.mxu0 0.0
    %1175 = vmatpush2.msra.mxu0 0.0
    %1176 = vmatprep.subr.mxu0 0.0
    %1177 = vmatpush2.msra.mxu0 0.0
    %1178 = vmatprep.subr.mxu0 0.0
    %1179 = vmatpush2.msra.mxu0 0.0
    %1180 = vmatprep.mubr.f32.mxu0 0.0
    %1181 = vmatmul.mubr.f32.gmra.mxu0 %v1114
    %v1182 = vpop.f32.mrf.mxu0
    %v1183 = vadd.f32 0.0, %v1182
    %v1184 = vpop.f32.mrf.mxu0
    %1185 = vdwg.mxu0
    %1186 = vset.pattern.permute.xlu0 1
    %1187 = vperm.xlu0 %1186, %v980
    %v1188 = vpop.permute.xlu0 %1187
    %v1190 = vlaneseq
    %v1191 = vshrl.u32 %v1190, 7
    %v1192 = vsub.s32 1, %v1191
    %v1193 = vrot.slane %v1085, %v1192
    %v1194 = vadd.f32 %v1188, %v1193
    %vm1195 = vcmp.gt.f32.partialorder %v1194, 0.0
    %v1196 = vmul.f32 %v1194, 0.2
    %v1197 = vsel %vm1195, %v1194, %v1196
    %v1198 = vadd.f32 %v1197, %v199
    %v1199 = vsel %vm495, %v1198, -inf
    %1200 = vmax.xlane.f32.xlu0 %v1199
    %v1201 = vpop.xlane.xlu0 %1200
    %v1202 = vsub.f32 %v1198, %v1201
    %v1203 = vmul.f32 %v1202, 1.442695
    %v1204 = vpow.pop %v1203
    %v1205 = vsel %vm495, %v1204, 0.0
    %1206 = vadd.xlane.f32.xlu0 %v1205
    %v1207 = vpop.xlane.xlu0 %1206
    %v1208 = vrcp.pop %v1207
    %v1209 = vmul.f32 %v1204, %v1208
    %1210 = vrot.lane.b32.xlu0 %v907, 96
    %v1211 = vpop.permute.xlu0 %1210
    %v1214 = vsel %vm495, %v1209, 0
    %1216 = vmatprep.subr.mxu0 0.0
    %1217 = vmatpush1.msra.mxu0 0.0
    %1218 = vmatprep.subr.mxu0 0.0
    %1219 = vmatpush1.msra.mxu0 0.0
    %1220 = vmatprep.subr.mxu0 0.0
    %1221 = vmatpush1.msra.mxu0 0.0
    %1222 = vmatprep.subr.mxu0 0.0
    %1223 = vmatpush1.msra.mxu0 0.0
    %1224 = vmatprep.subr.mxu0 0.0
    %1225 = vmatpush1.msra.mxu0 0.0
    %1226 = vmatprep.subr.mxu0 0.0
    %1227 = vmatpush1.msra.mxu0 0.0
    %1228 = vmatprep.subr.mxu0 0.0
    %1229 = vmatpush1.msra.mxu0 0.0
    %1230 = vmatprep.subr.mxu0 0.0
    %1231 = vmatpush1.msra.mxu0 0.0
    %1232 = vmatprep.subr.mxu0 0.0
    %1233 = vmatpush1.msra.mxu0 0.0
    %1234 = vmatprep.subr.mxu0 0.0
    %1235 = vmatpush1.msra.mxu0 0.0
    %1236 = vmatprep.subr.mxu0 0.0
    %1237 = vmatpush1.msra.mxu0 0.0
    %1238 = vmatprep.subr.mxu0 0.0
    %1239 = vmatpush1.msra.mxu0 0.0
    %1240 = vmatprep.subr.mxu0 0.0
    %1241 = vmatpush1.msra.mxu0 0.0
    %1242 = vmatprep.subr.mxu0 0.0
    %1243 = vmatpush1.msra.mxu0 0.0
    %1244 = vmatprep.subr.mxu0 0.0
    %1245 = vmatpush1.msra.mxu0 0.0
    %1246 = vmatprep.subr.mxu0 0.0
    %1247 = vmatpush1.msra.mxu0 %v1211
    %1248 = vmatprep.subr.mxu0 0.0
    %1249 = vmatpush2.msra.mxu0 0.0
    %1250 = vmatprep.subr.mxu0 0.0
    %1251 = vmatpush2.msra.mxu0 0.0
    %1252 = vmatprep.subr.mxu0 0.0
    %1253 = vmatpush2.msra.mxu0 0.0
    %1254 = vmatprep.subr.mxu0 0.0
    %1255 = vmatpush2.msra.mxu0 0.0
    %1256 = vmatprep.subr.mxu0 0.0
    %1257 = vmatpush2.msra.mxu0 0.0
    %1258 = vmatprep.subr.mxu0 0.0
    %1259 = vmatpush2.msra.mxu0 0.0
    %1260 = vmatprep.subr.mxu0 0.0
    %1261 = vmatpush2.msra.mxu0 0.0
    %1262 = vmatprep.subr.mxu0 0.0
    %1263 = vmatpush2.msra.mxu0 0.0
    %1264 = vmatprep.subr.mxu0 0.0
    %1265 = vmatpush2.msra.mxu0 0.0
    %1266 = vmatprep.subr.mxu0 0.0
    %1267 = vmatpush2.msra.mxu0 0.0
    %1268 = vmatprep.subr.mxu0 0.0
    %1269 = vmatpush2.msra.mxu0 0.0
    %1270 = vmatprep.subr.mxu0 0.0
    %1271 = vmatpush2.msra.mxu0 0.0
    %1272 = vmatprep.subr.mxu0 0.0
    %1273 = vmatpush2.msra.mxu0 0.0
    %1274 = vmatprep.subr.mxu0 0.0
    %1275 = vmatpush2.msra.mxu0 0.0
    %1276 = vmatprep.subr.mxu0 0.0
    %1277 = vmatpush2.msra.mxu0 0.0
    %1278 = vmatprep.subr.mxu0 0.0
    %1279 = vmatpush2.msra.mxu0 0.0
    %1280 = vmatprep.mubr.f32.mxu0 0.0
    %1281 = vmatmul.mubr.f32.gmra.mxu0 %v1214
    %v1282 = vpop.f32.mrf.mxu0
    %v1283 = vadd.f32 0.0, %v1282
    %v1284 = vpop.f32.mrf.mxu0
    %1285 = vdwg.mxu0
    %1286 = vset.pattern.permute.xlu0 2
    %1287 = vperm.xlu0 %1286, %v980
    %v1288 = vpop.permute.xlu0 %1287
    %v1290 = vlaneseq
    %v1291 = vshrl.u32 %v1290, 7
    %v1292 = vsub.s32 2, %v1291
    %v1293 = vrot.slane %v1085, %v1292
    %v1294 = vadd.f32 %v1288, %v1293
    %vm1295 = vcmp.gt.f32.partialorder %v1294, 0.0
    %v1296 = vmul.f32 %v1294, 0.2
    %v1297 = vsel %vm1295, %v1294, %v1296
    %v1298 = vadd.f32 %v1297, %v199
    %v1299 = vsel %vm495, %v1298, -inf
    %1300 = vmax.xlane.f32.xlu0 %v1299
    %v1301 = vpop.xlane.xlu0 %1300
    %v1302 = vsub.f32 %v1298, %v1301
    %v1303 = vmul.f32 %v1302, 1.442695
    %v1304 = vpow.pop %v1303
    %v1305 = vsel %vm495, %v1304, 0.0
    %1306 = vadd.xlane.f32.xlu0 %v1305
    %v1307 = vpop.xlane.xlu0 %1306
    %v1308 = vrcp.pop %v1307
    %v1309 = vmul.f32 %v1304, %v1308
    %1310 = vrot.lane.b32.xlu0 %v907, 64
    %v1311 = vpop.permute.xlu0 %1310
    %v1314 = vsel %vm495, %v1309, 0
    %1316 = vmatprep.subr.mxu0 0.0
    %1317 = vmatpush1.msra.mxu0 0.0
    %1318 = vmatprep.subr.mxu0 0.0
    %1319 = vmatpush1.msra.mxu0 0.0
    %1320 = vmatprep.subr.mxu0 0.0
    %1321 = vmatpush1.msra.mxu0 0.0
    %1322 = vmatprep.subr.mxu0 0.0
    %1323 = vmatpush1.msra.mxu0 0.0
    %1324 = vmatprep.subr.mxu0 0.0
    %1325 = vmatpush1.msra.mxu0 0.0
    %1326 = vmatprep.subr.mxu0 0.0
    %1327 = vmatpush1.msra.mxu0 0.0
    %1328 = vmatprep.subr.mxu0 0.0
    %1329 = vmatpush1.msra.mxu0 0.0
    %1330 = vmatprep.subr.mxu0 0.0
    %1331 = vmatpush1.msra.mxu0 0.0
    %1332 = vmatprep.subr.mxu0 0.0
    %1333 = vmatpush1.msra.mxu0 0.0
    %1334 = vmatprep.subr.mxu0 0.0
    %1335 = vmatpush1.msra.mxu0 0.0
    %1336 = vmatprep.subr.mxu0 0.0
    %1337 = vmatpush1.msra.mxu0 0.0
    %1338 = vmatprep.subr.mxu0 0.0
    %1339 = vmatpush1.msra.mxu0 0.0
    %1340 = vmatprep.subr.mxu0 0.0
    %1341 = vmatpush1.msra.mxu0 0.0
    %1342 = vmatprep.subr.mxu0 0.0
    %1343 = vmatpush1.msra.mxu0 0.0
    %1344 = vmatprep.subr.mxu0 0.0
    %1345 = vmatpush1.msra.mxu0 0.0
    %1346 = vmatprep.subr.mxu0 0.0
    %1347 = vmatpush1.msra.mxu0 %v1311
    %1348 = vmatprep.subr.mxu0 0.0
    %1349 = vmatpush2.msra.mxu0 0.0
    %1350 = vmatprep.subr.mxu0 0.0
    %1351 = vmatpush2.msra.mxu0 0.0
    %1352 = vmatprep.subr.mxu0 0.0
    %1353 = vmatpush2.msra.mxu0 0.0
    %1354 = vmatprep.subr.mxu0 0.0
    %1355 = vmatpush2.msra.mxu0 0.0
    %1356 = vmatprep.subr.mxu0 0.0
    %1357 = vmatpush2.msra.mxu0 0.0
    %1358 = vmatprep.subr.mxu0 0.0
    %1359 = vmatpush2.msra.mxu0 0.0
    %1360 = vmatprep.subr.mxu0 0.0
    %1361 = vmatpush2.msra.mxu0 0.0
    %1362 = vmatprep.subr.mxu0 0.0
    %1363 = vmatpush2.msra.mxu0 0.0
    %1364 = vmatprep.subr.mxu0 0.0
    %1365 = vmatpush2.msra.mxu0 0.0
    %1366 = vmatprep.subr.mxu0 0.0
    %1367 = vmatpush2.msra.mxu0 0.0
    %1368 = vmatprep.subr.mxu0 0.0
    %1369 = vmatpush2.msra.mxu0 0.0
    %1370 = vmatprep.subr.mxu0 0.0
    %1371 = vmatpush2.msra.mxu0 0.0
    %1372 = vmatprep.subr.mxu0 0.0
    %1373 = vmatpush2.msra.mxu0 0.0
    %1374 = vmatprep.subr.mxu0 0.0
    %1375 = vmatpush2.msra.mxu0 0.0
    %1376 = vmatprep.subr.mxu0 0.0
    %1377 = vmatpush2.msra.mxu0 0.0
    %1378 = vmatprep.subr.mxu0 0.0
    %1379 = vmatpush2.msra.mxu0 0.0
    %1380 = vmatprep.mubr.f32.mxu0 0.0
    %1381 = vmatmul.mubr.f32.gmra.mxu0 %v1314
    %v1382 = vpop.f32.mrf.mxu0
    %v1383 = vadd.f32 0.0, %v1382
    %v1384 = vpop.f32.mrf.mxu0
    %1385 = vdwg.mxu0
    %1387 = vrot.lane.b32.xlu0 %v1283, 32
    %v1388 = vpop.permute.xlu0 %1387
    %1391 = vrot.lane.b32.xlu0 %v1383, 64
    %v1392 = vpop.permute.xlu0 %1391
    %v1394 = vsel %vm788, %v1183, %v1388
    %v1395 = vsel %vm790, %v1394, %v1392
    %v1397 = vlaneseq
    %v1398 = vshrl.u32 %v1397, 7
    %v1399 = vsub.s32 0, %v1398
    %v1400 = vrot.slane %v836, %v1399
    %v1402 = vadd.f32 %v1395, %v1400
    %v1403 = vmax.f32 %v1402, 0.0
    %v1404 = vld [vmem:[%s10] sm:$0xff]
    %v1405 = vld [vmem:[%s10 + $0x8] sm:$0xff]
    %v1406 = vld [vmem:[%s10 + $0x10] sm:$0xff]
    %v1407 = vld [vmem:[%s10 + $0x18] sm:$0xff]
    %v1408 = vld [vmem:[%s10 + $0x20] sm:$0xff]
    %v1409 = vld [vmem:[%s10 + $0x28] sm:$0xff]
    %v1410 = vld [vmem:[%s10 + $0x30] sm:$0xff]
    %v1411 = vld [vmem:[%s10 + $0x38] sm:$0xff]
    %v1412 = vld [vmem:[%s10 + $0x40] sm:$0xff]
    %v1413 = vld [vmem:[%s10 + $0x48] sm:$0xff]
    %v1414 = vld [vmem:[%s10 + $0x50] sm:$0xff]
    %v1415 = vld [vmem:[%s10 + $0x58] sm:$0xff]
    %v1416 = vld [vmem:[%s11] sm:$0xff]
    %v1417 = vld [vmem:[%s11 + $0x8] sm:$0xff]
    %v1418 = vld [vmem:[%s11 + $0x10] sm:$0xff]
    %v1419 = vld [vmem:[%s11 + $0x18] sm:$0xff]
    %v1420 = vld [vmem:[%s12] sm:$0xff]
    %v1421 = vld [vmem:[%s12 + $0x8] sm:$0xff]
    %v1422 = vld [vmem:[%s12 + $0x10] sm:$0xff]
    %v1423 = vld [vmem:[%s12 + $0x18] sm:$0xff]
    %v1424 = vld [vmem:[%s13] sm:$0x1]
    %v1426 = vsel %vm302, %v1403, 0
    %1428 = vmatprep.subr.mxu0 0.0
    %1429 = vmatpush1.msra.mxu0 0.0
    %1430 = vmatprep.subr.mxu0 0.0
    %1431 = vmatpush1.msra.mxu0 0.0
    %1432 = vmatprep.subr.mxu0 0.0
    %1433 = vmatpush1.msra.mxu0 0.0
    %1434 = vmatprep.subr.mxu0 0.0
    %1435 = vmatpush1.msra.mxu0 0.0
    %1436 = vmatprep.subr.mxu0 0.0
    %1437 = vmatpush1.msra.mxu0 %v1415
    %1438 = vmatprep.subr.mxu0 0.0
    %1439 = vmatpush1.msra.mxu0 %v1414
    %1440 = vmatprep.subr.mxu0 0.0
    %1441 = vmatpush1.msra.mxu0 %v1413
    %1442 = vmatprep.subr.mxu0 0.0
    %1443 = vmatpush1.msra.mxu0 %v1412
    %1444 = vmatprep.subr.mxu0 0.0
    %1445 = vmatpush1.msra.mxu0 %v1411
    %1446 = vmatprep.subr.mxu0 0.0
    %1447 = vmatpush1.msra.mxu0 %v1410
    %1448 = vmatprep.subr.mxu0 0.0
    %1449 = vmatpush1.msra.mxu0 %v1409
    %1450 = vmatprep.subr.mxu0 0.0
    %1451 = vmatpush1.msra.mxu0 %v1408
    %1452 = vmatprep.subr.mxu0 0.0
    %1453 = vmatpush1.msra.mxu0 %v1407
    %1454 = vmatprep.subr.mxu0 0.0
    %1455 = vmatpush1.msra.mxu0 %v1406
    %1456 = vmatprep.subr.mxu0 0.0
    %1457 = vmatpush1.msra.mxu0 %v1405
    %1458 = vmatprep.subr.mxu0 0.0
    %1459 = vmatpush1.msra.mxu0 %v1404
    %1460 = vmatprep.subr.mxu0 0.0
    %1461 = vmatpush2.msra.mxu0 0.0
    %1462 = vmatprep.subr.mxu0 0.0
    %1463 = vmatpush2.msra.mxu0 0.0
    %1464 = vmatprep.subr.mxu0 0.0
    %1465 = vmatpush2.msra.mxu0 0.0
    %1466 = vmatprep.subr.mxu0 0.0
    %1467 = vmatpush2.msra.mxu0 0.0
    %1468 = vmatprep.subr.mxu0 0.0
    %1469 = vmatpush2.msra.mxu0 0.0
    %1470 = vmatprep.subr.mxu0 0.0
    %1471 = vmatpush2.msra.mxu0 0.0
    %1472 = vmatprep.subr.mxu0 0.0
    %1473 = vmatpush2.msra.mxu0 0.0
    %1474 = vmatprep.subr.mxu0 0.0
    %1475 = vmatpush2.msra.mxu0 0.0
    %1476 = vmatprep.subr.mxu0 0.0
    %1477 = vmatpush2.msra.mxu0 0.0
    %1478 = vmatprep.subr.mxu0 0.0
    %1479 = vmatpush2.msra.mxu0 0.0
    %1480 = vmatprep.subr.mxu0 0.0
    %1481 = vmatpush2.msra.mxu0 0.0
    %1482 = vmatprep.subr.mxu0 0.0
    %1483 = vmatpush2.msra.mxu0 0.0
    %1484 = vmatprep.subr.mxu0 0.0
    %1485 = vmatpush2.msra.mxu0 0.0
    %1486 = vmatprep.subr.mxu0 0.0
    %1487 = vmatpush2.msra.mxu0 0.0
    %1488 = vmatprep.subr.mxu0 0.0
    %1489 = vmatpush2.msra.mxu0 0.0
    %1490 = vmatprep.subr.mxu0 0.0
    %1491 = vmatpush2.msra.mxu0 0.0
    %1492 = vmatprep.mubr.f32.mxu0 0.0
    %1493 = vmatmul.mubr.f32.gmra.mxu0 %v1426
    %v1494 = vpop.f32.mrf.mxu0
    %v1495 = vadd.f32 0.0, %v1494
    %v1496 = vpop.f32.mrf.mxu0
    %1497 = vdwg.mxu0
    %v1499 = vsel %vm788, %v1495, 0
    %1501 = vmatprep.subr.mxu0 0.0
    %1502 = vmatpush1.msra.mxu0 0.0
    %1503 = vmatprep.subr.mxu0 0.0
    %1504 = vmatpush1.msra.mxu0 0.0
    %1505 = vmatprep.subr.mxu0 0.0
    %1506 = vmatpush1.msra.mxu0 0.0
    %1507 = vmatprep.subr.mxu0 0.0
    %1508 = vmatpush1.msra.mxu0 0.0
    %1509 = vmatprep.subr.mxu0 0.0
    %1510 = vmatpush1.msra.mxu0 0.0
    %1511 = vmatprep.subr.mxu0 0.0
    %1512 = vmatpush1.msra.mxu0 0.0
    %1513 = vmatprep.subr.mxu0 0.0
    %1514 = vmatpush1.msra.mxu0 0.0
    %1515 = vmatprep.subr.mxu0 0.0
    %1516 = vmatpush1.msra.mxu0 0.0
    %1517 = vmatprep.subr.mxu0 0.0
    %1518 = vmatpush1.msra.mxu0 0.0
    %1519 = vmatprep.subr.mxu0 0.0
    %1520 = vmatpush1.msra.mxu0 0.0
    %1521 = vmatprep.subr.mxu0 0.0
    %1522 = vmatpush1.msra.mxu0 0.0
    %1523 = vmatprep.subr.mxu0 0.0
    %1524 = vmatpush1.msra.mxu0 0.0
    %1525 = vmatprep.subr.mxu0 0.0
    %1526 = vmatpush1.msra.mxu0 %v1419
    %1527 = vmatprep.subr.mxu0 0.0
    %1528 = vmatpush1.msra.mxu0 %v1418
    %1529 = vmatprep.subr.mxu0 0.0
    %1530 = vmatpush1.msra.mxu0 %v1417
    %1531 = vmatprep.subr.mxu0 0.0
    %1532 = vmatpush1.msra.mxu0 %v1416
    %1533 = vmatprep.subr.mxu0 0.0
    %1534 = vmatpush2.msra.mxu0 0.0
    %1535 = vmatprep.subr.mxu0 0.0
    %1536 = vmatpush2.msra.mxu0 0.0
    %1537 = vmatprep.subr.mxu0 0.0
    %1538 = vmatpush2.msra.mxu0 0.0
    %1539 = vmatprep.subr.mxu0 0.0
    %1540 = vmatpush2.msra.mxu0 0.0
    %1541 = vmatprep.subr.mxu0 0.0
    %1542 = vmatpush2.msra.mxu0 0.0
    %1543 = vmatprep.subr.mxu0 0.0
    %1544 = vmatpush2.msra.mxu0 0.0
    %1545 = vmatprep.subr.mxu0 0.0
    %1546 = vmatpush2.msra.mxu0 0.0
    %1547 = vmatprep.subr.mxu0 0.0
    %1548 = vmatpush2.msra.mxu0 0.0
    %1549 = vmatprep.subr.mxu0 0.0
    %1550 = vmatpush2.msra.mxu0 0.0
    %1551 = vmatprep.subr.mxu0 0.0
    %1552 = vmatpush2.msra.mxu0 0.0
    %1553 = vmatprep.subr.mxu0 0.0
    %1554 = vmatpush2.msra.mxu0 0.0
    %1555 = vmatprep.subr.mxu0 0.0
    %1556 = vmatpush2.msra.mxu0 0.0
    %1557 = vmatprep.subr.mxu0 0.0
    %1558 = vmatpush2.msra.mxu0 0.0
    %1559 = vmatprep.subr.mxu0 0.0
    %1560 = vmatpush2.msra.mxu0 0.0
    %1561 = vmatprep.subr.mxu0 0.0
    %1562 = vmatpush2.msra.mxu0 0.0
    %1563 = vmatprep.subr.mxu0 0.0
    %1564 = vmatpush2.msra.mxu0 0.0
    %1565 = vmatprep.mubr.f32.mxu0 0.0
    %1566 = vmatmul.mubr.f32.gmra.mxu0 %v1499
    %v1567 = vpop.f32.mrf.mxu0
    %v1568 = vadd.f32 0.0, %v1567
    %v1569 = vpop.f32.mrf.mxu0
    %1570 = vdwg.mxu0
    %1571 = vxpose.xlu0.b32.start [1/16] %v1420, 128
    %1572 = vxpose.xlu0.b32.cont [2/16] %v1421, 128
    %1573 = vxpose.xlu0.b32.cont [3/16] %v1422, 128
    %1574 = vxpose.xlu0.b32.cont [4/16] %v1423, 128
    %1575 = vxpose.xlu0.b32.cont [5/16] 0.0, 128
    %1576 = vxpose.xlu0.b32.cont [6/16] 0.0, 128
    %1577 = vxpose.xlu0.b32.cont [7/16] 0.0, 128
    %1578 = vxpose.xlu0.b32.cont [8/16] 0.0, 128
    %1579 = vxpose.xlu0.b32.cont [9/16] 0.0, 128
    %1580 = vxpose.xlu0.b32.cont [10/16] 0.0, 128
    %1581 = vxpose.xlu0.b32.cont [11/16] 0.0, 128
    %1582 = vxpose.xlu0.b32.cont [12/16] 0.0, 128
    %1583 = vxpose.xlu0.b32.cont [13/16] 0.0, 128
    %1584 = vxpose.xlu0.b32.cont [14/16] 0.0, 128
    %1585 = vxpose.xlu0.b32.cont [15/16] 0.0, 128
    %1586 = vxpose.xlu0.b32.end [16/16] 0.0, 128
    %v1587 = vpop.trf.xlu0
    %v1588 = vpop.trf.xlu0
    %v1589 = vpop.trf.xlu0
    %v1590 = vpop.trf.xlu0
    %v1591 = vpop.trf.xlu0
    %v1592 = vpop.trf.xlu0
    %v1593 = vpop.trf.xlu0
    %v1594 = vpop.trf.xlu0
    %v1595 = vpop.trf.xlu0
    %v1596 = vpop.trf.xlu0
    %v1597 = vpop.trf.xlu0
    %v1598 = vpop.trf.xlu0
    %v1599 = vpop.trf.xlu0
    %v1600 = vpop.trf.xlu0
    %v1601 = vpop.trf.xlu0
    %v1602 = vpop.trf.xlu0
    %v1604 = vsel %vm788, %v1587, 0
    %1606 = vmatprep.subr.mxu0 0.0
    %1607 = vmatpush1.xpose.msra.mxu0 0.0
    %1608 = vmatprep.subr.mxu0 0.0
    %1609 = vmatpush1.xpose.msra.mxu0 0.0
    %1610 = vmatprep.subr.mxu0 0.0
    %1611 = vmatpush1.xpose.msra.mxu0 0.0
    %1612 = vmatprep.subr.mxu0 0.0
    %1613 = vmatpush1.xpose.msra.mxu0 0.0
    %1614 = vmatprep.subr.mxu0 0.0
    %1615 = vmatpush1.xpose.msra.mxu0 0.0
    %1616 = vmatprep.subr.mxu0 0.0
    %1617 = vmatpush1.xpose.msra.mxu0 0.0
    %1618 = vmatprep.subr.mxu0 0.0
    %1619 = vmatpush1.xpose.msra.mxu0 0.0
    %1620 = vmatprep.subr.mxu0 0.0
    %1621 = vmatpush1.xpose.msra.mxu0 0.0
    %1622 = vmatprep.subr.mxu0 0.0
    %1623 = vmatpush1.xpose.msra.mxu0 0.0
    %1624 = vmatprep.subr.mxu0 0.0
    %1625 = vmatpush1.xpose.msra.mxu0 0.0
    %1626 = vmatprep.subr.mxu0 0.0
    %1627 = vmatpush1.xpose.msra.mxu0 0.0
    %1628 = vmatprep.subr.mxu0 0.0
    %1629 = vmatpush1.xpose.msra.mxu0 0.0
    %1630 = vmatprep.subr.mxu0 0.0
    %1631 = vmatpush1.xpose.msra.mxu0 0.0
    %1632 = vmatprep.subr.mxu0 0.0
    %1633 = vmatpush1.xpose.msra.mxu0 0.0
    %1634 = vmatprep.subr.mxu0 0.0
    %1635 = vmatpush1.xpose.msra.mxu0 0.0
    %1636 = vmatprep.subr.mxu0 0.0
    %1637 = vmatpush1.xpose.msra.mxu0 %v1499
    %1638 = vmatprep.subr.mxu0 0.0
    %1639 = vmatpush2.xpose.msra.mxu0 0.0
    %1640 = vmatprep.subr.mxu0 0.0
    %1641 = vmatpush2.xpose.msra.mxu0 0.0
    %1642 = vmatprep.subr.mxu0 0.0
    %1643 = vmatpush2.xpose.msra.mxu0 0.0
    %1644 = vmatprep.subr.mxu0 0.0
    %1645 = vmatpush2.xpose.msra.mxu0 0.0
    %1646 = vmatprep.subr.mxu0 0.0
    %1647 = vmatpush2.xpose.msra.mxu0 0.0
    %1648 = vmatprep.subr.mxu0 0.0
    %1649 = vmatpush2.xpose.msra.mxu0 0.0
    %1650 = vmatprep.subr.mxu0 0.0
    %1651 = vmatpush2.xpose.msra.mxu0 0.0
    %1652 = vmatprep.subr.mxu0 0.0
    %1653 = vmatpush2.xpose.msra.mxu0 0.0
    %1654 = vmatprep.subr.mxu0 0.0
    %1655 = vmatpush2.xpose.msra.mxu0 0.0
    %1656 = vmatprep.subr.mxu0 0.0
    %1657 = vmatpush2.xpose.msra.mxu0 0.0
    %1658 = vmatprep.subr.mxu0 0.0
    %1659 = vmatpush2.xpose.msra.mxu0 0.0
    %1660 = vmatprep.subr.mxu0 0.0
    %1661 = vmatpush2.xpose.msra.mxu0 0.0
    %1662 = vmatprep.subr.mxu0 0.0
    %1663 = vmatpush2.xpose.msra.mxu0 0.0
    %1664 = vmatprep.subr.mxu0 0.0
    %1665 = vmatpush2.xpose.msra.mxu0 0.0
    %1666 = vmatprep.subr.mxu0 0.0
    %1667 = vmatpush2.xpose.msra.mxu0 0.0
    %1668 = vmatprep.subr.mxu0 0.0
    %1669 = vmatpush2.xpose.msra.mxu0 0.0
    %1670 = vmatprep.mubr.f32.mxu0 0.0
    %1671 = vmatmul.mubr.f32.gmra.mxu0 %v1604
    %v1672 = vpop.f32.mrf.mxu0
    %v1673 = vadd.f32 0.0, %v1672
    %v1674 = vpop.f32.mrf.mxu0
    %1675 = vdwg.mxu0
    %1677 = vset.pattern.permute.xlu0 0
    %1678 = vperm.xlu0 %1677, %v1568
    %v1679 = vpop.permute.xlu0 %1678
    %v1681 = vlaneseq
    %v1682 = vshrl.u32 %v1681, 7
    %v1683 = vsub.s32 0, %v1682
    %v1684 = vrot.slane %v1673, %v1683
    %v1685 = vadd.f32 %v1679, %v1684
    %vm1686 = vcmp.gt.f32.partialorder %v1685, 0.0
    %v1687 = vmul.f32 %v1685, 0.2
    %v1688 = vsel %vm1686, %v1685, %v1687
    %v1689 = vadd.f32 %v1688, %v199
    %v1690 = vsel %vm495, %v1689, -inf
    %1691 = vmax.xlane.f32.xlu0 %v1690
    %v1692 = vpop.xlane.xlu0 %1691
    %v1693 = vsub.f32 %v1689, %v1692
    %v1694 = vmul.f32 %v1693, 1.442695
    %v1695 = vpow.pop %v1694
    %v1696 = vsel %vm495, %v1695, 0.0
    %1697 = vadd.xlane.f32.xlu0 %v1696
    %v1698 = vpop.xlane.xlu0 %1697
    %v1699 = vrcp.pop %v1698
    %v1700 = vmul.f32 %v1695, %v1699
    %v1702 = vlaneseq
    %v1703 = vshrl.u32 %v1702, 7
    %v1704 = vsub.s32 0, %v1703
    %v1705 = vrot.slane %v1424, %v1704
    %v1708 = vsel %vm495, %v1700, 0
    %1710 = vmatprep.subr.mxu0 0.0
    %1711 = vmatpush1.msra.mxu0 0.0
    %1712 = vmatprep.subr.mxu0 0.0
    %1713 = vmatpush1.msra.mxu0 0.0
    %1714 = vmatprep.subr.mxu0 0.0
    %1715 = vmatpush1.msra.mxu0 0.0
    %1716 = vmatprep.subr.mxu0 0.0
    %1717 = vmatpush1.msra.mxu0 0.0
    %1718 = vmatprep.subr.mxu0 0.0
    %1719 = vmatpush1.msra.mxu0 0.0
    %1720 = vmatprep.subr.mxu0 0.0
    %1721 = vmatpush1.msra.mxu0 0.0
    %1722 = vmatprep.subr.mxu0 0.0
    %1723 = vmatpush1.msra.mxu0 0.0
    %1724 = vmatprep.subr.mxu0 0.0
    %1725 = vmatpush1.msra.mxu0 0.0
    %1726 = vmatprep.subr.mxu0 0.0
    %1727 = vmatpush1.msra.mxu0 0.0
    %1728 = vmatprep.subr.mxu0 0.0
    %1729 = vmatpush1.msra.mxu0 0.0
    %1730 = vmatprep.subr.mxu0 0.0
    %1731 = vmatpush1.msra.mxu0 0.0
    %1732 = vmatprep.subr.mxu0 0.0
    %1733 = vmatpush1.msra.mxu0 0.0
    %1734 = vmatprep.subr.mxu0 0.0
    %1735 = vmatpush1.msra.mxu0 0.0
    %1736 = vmatprep.subr.mxu0 0.0
    %1737 = vmatpush1.msra.mxu0 0.0
    %1738 = vmatprep.subr.mxu0 0.0
    %1739 = vmatpush1.msra.mxu0 0.0
    %1740 = vmatprep.subr.mxu0 0.0
    %1741 = vmatpush1.msra.mxu0 %v1495
    %1742 = vmatprep.subr.mxu0 0.0
    %1743 = vmatpush2.msra.mxu0 0.0
    %1744 = vmatprep.subr.mxu0 0.0
    %1745 = vmatpush2.msra.mxu0 0.0
    %1746 = vmatprep.subr.mxu0 0.0
    %1747 = vmatpush2.msra.mxu0 0.0
    %1748 = vmatprep.subr.mxu0 0.0
    %1749 = vmatpush2.msra.mxu0 0.0
    %1750 = vmatprep.subr.mxu0 0.0
    %1751 = vmatpush2.msra.mxu0 0.0
    %1752 = vmatprep.subr.mxu0 0.0
    %1753 = vmatpush2.msra.mxu0 0.0
    %1754 = vmatprep.subr.mxu0 0.0
    %1755 = vmatpush2.msra.mxu0 0.0
    %1756 = vmatprep.subr.mxu0 0.0
    %1757 = vmatpush2.msra.mxu0 0.0
    %1758 = vmatprep.subr.mxu0 0.0
    %1759 = vmatpush2.msra.mxu0 0.0
    %1760 = vmatprep.subr.mxu0 0.0
    %1761 = vmatpush2.msra.mxu0 0.0
    %1762 = vmatprep.subr.mxu0 0.0
    %1763 = vmatpush2.msra.mxu0 0.0
    %1764 = vmatprep.subr.mxu0 0.0
    %1765 = vmatpush2.msra.mxu0 0.0
    %1766 = vmatprep.subr.mxu0 0.0
    %1767 = vmatpush2.msra.mxu0 0.0
    %1768 = vmatprep.subr.mxu0 0.0
    %1769 = vmatpush2.msra.mxu0 0.0
    %1770 = vmatprep.subr.mxu0 0.0
    %1771 = vmatpush2.msra.mxu0 0.0
    %1772 = vmatprep.subr.mxu0 0.0
    %1773 = vmatpush2.msra.mxu0 0.0
    %1774 = vmatprep.mubr.f32.mxu0 0.0
    %1775 = vmatmul.mubr.f32.gmra.mxu0 %v1708
    %v1776 = vpop.f32.mrf.mxu0
    %v1777 = vadd.f32 %v1705, %v1776
    %v1778 = vpop.f32.mrf.mxu0
    %1779 = vdwg.mxu0
    %v1780 = vld [vmem:[%s14] sm:$0xff]
    %v1781 = vld [vmem:[%s14 + $0x8] sm:$0xff]
    %v1782 = vld [vmem:[%s14 + $0x10] sm:$0xff]
    %v1783 = vld [vmem:[%s14 + $0x18] sm:$0xff]
    %v1784 = vld [vmem:[%s15] sm:$0x1]
    %v1786 = vlaneseq
    %v1787 = vshrl.u32 %v1786, 7
    %v1788 = vsub.s32 0, %v1787
    %v1789 = vrot.slane %v1784, %v1788
    %v1792 = vsel %vm788, %v1777, 0
    %1794 = vmatprep.subr.mxu0 0.0
    %1795 = vmatpush1.msra.mxu0 0.0
    %1796 = vmatprep.subr.mxu0 0.0
    %1797 = vmatpush1.msra.mxu0 0.0
    %1798 = vmatprep.subr.mxu0 0.0
    %1799 = vmatpush1.msra.mxu0 0.0
    %1800 = vmatprep.subr.mxu0 0.0
    %1801 = vmatpush1.msra.mxu0 0.0
    %1802 = vmatprep.subr.mxu0 0.0
    %1803 = vmatpush1.msra.mxu0 0.0
    %1804 = vmatprep.subr.mxu0 0.0
    %1805 = vmatpush1.msra.mxu0 0.0
    %1806 = vmatprep.subr.mxu0 0.0
    %1807 = vmatpush1.msra.mxu0 0.0
    %1808 = vmatprep.subr.mxu0 0.0
    %1809 = vmatpush1.msra.mxu0 0.0
    %1810 = vmatprep.subr.mxu0 0.0
    %1811 = vmatpush1.msra.mxu0 0.0
    %1812 = vmatprep.subr.mxu0 0.0
    %1813 = vmatpush1.msra.mxu0 0.0
    %1814 = vmatprep.subr.mxu0 0.0
    %1815 = vmatpush1.msra.mxu0 0.0
    %1816 = vmatprep.subr.mxu0 0.0
    %1817 = vmatpush1.msra.mxu0 0.0
    %1818 = vmatprep.subr.mxu0 0.0
    %1819 = vmatpush1.msra.mxu0 %v1783
    %1820 = vmatprep.subr.mxu0 0.0
    %1821 = vmatpush1.msra.mxu0 %v1782
    %1822 = vmatprep.subr.mxu0 0.0
    %1823 = vmatpush1.msra.mxu0 %v1781
    %1824 = vmatprep.subr.mxu0 0.0
    %1825 = vmatpush1.msra.mxu0 %v1780
    %1826 = vmatprep.subr.mxu0 0.0
    %1827 = vmatpush2.msra.mxu0 0.0
    %1828 = vmatprep.subr.mxu0 0.0
    %1829 = vmatpush2.msra.mxu0 0.0
    %1830 = vmatprep.subr.mxu0 0.0
    %1831 = vmatpush2.msra.mxu0 0.0
    %1832 = vmatprep.subr.mxu0 0.0
    %1833 = vmatpush2.msra.mxu0 0.0
    %1834 = vmatprep.subr.mxu0 0.0
    %1835 = vmatpush2.msra.mxu0 0.0
    %1836 = vmatprep.subr.mxu0 0.0
    %1837 = vmatpush2.msra.mxu0 0.0
    %1838 = vmatprep.subr.mxu0 0.0
    %1839 = vmatpush2.msra.mxu0 0.0
    %1840 = vmatprep.subr.mxu0 0.0
    %1841 = vmatpush2.msra.mxu0 0.0
    %1842 = vmatprep.subr.mxu0 0.0
    %1843 = vmatpush2.msra.mxu0 0.0
    %1844 = vmatprep.subr.mxu0 0.0
    %1845 = vmatpush2.msra.mxu0 0.0
    %1846 = vmatprep.subr.mxu0 0.0
    %1847 = vmatpush2.msra.mxu0 0.0
    %1848 = vmatprep.subr.mxu0 0.0
    %1849 = vmatpush2.msra.mxu0 0.0
    %1850 = vmatprep.subr.mxu0 0.0
    %1851 = vmatpush2.msra.mxu0 0.0
    %1852 = vmatprep.subr.mxu0 0.0
    %1853 = vmatpush2.msra.mxu0 0.0
    %1854 = vmatprep.subr.mxu0 0.0
    %1855 = vmatpush2.msra.mxu0 0.0
    %1856 = vmatprep.subr.mxu0 0.0
    %1857 = vmatpush2.msra.mxu0 0.0
    %1858 = vmatprep.mubr.f32.mxu0 0.0
    %1859 = vmatmul.mubr.f32.gmra.mxu0 %v1792
    %v1860 = vpop.f32.mrf.mxu0
    %v1861 = vadd.f32 %v1789, %v1860
    %v1862 = vpop.f32.mrf.mxu0
    %1863 = vdwg.mxu0
    %vm1864 = vcmask 31744
    %1865 = vst.msk [vmem:[%s16] sm:$0xff] %vm1864, %v1861
    // Predicated region
    $region70: #{tpu_custom_call.1} parent=1 // pred_check
      _
    $region71: #{tpu_custom_call.1} parent=1 // pred_check_branch
      %1867 = sbr.rel (0) target = $region73
    $region72: #{tpu_custom_call.1} parent=1 // pred_region
      _
    $region73: #{tpu_custom_call.1} parent=1 // pred_fallthru
      _
    // Predicated region
    $region74: #{tpu_custom_call.1} parent=1 // pred_check
      _
    $region75: #{tpu_custom_call.1} parent=1 // pred_check_branch
      %1869 = sbr.rel (0) target = $region77
    $region76: #{tpu_custom_call.1} parent=1 // pred_region
      _
    $region77: #{tpu_custom_call.1} parent=1 // pred_fallthru
      _
    %1870 = vsyncpa [#allocation3], 1

</llo_original>
